<compile_context>
chip_gen: v6e
topology: v6e:2x2x1
jax: 0.10.0
libtpu: 0.0.40
codegen_flags: <defaults>
</compile_context>

<pallas_src>
import math

import jax
import jax.numpy as jnp
from jax.experimental import pallas as pl
from jax.experimental.pallas import tpu as pltpu


def mha_pallas(x, w_qkv, b_qkv, w_proj, b_proj, *, num_heads):
    """x: (B, N, D). w_qkv: (D, 3D) with interleaved (h, d, qkv) columns
    (i.e. the transpose of the PyTorch nn.Linear weight). w_proj: (D, D)
    (transpose of PyTorch weight). Returns (out (B,N,D), attn (B,H,N,N))."""
    B, N, D = x.shape
    H = num_heads
    d = D // H
    assert d * H == D, "embed_dim must be divisible by num_heads"
    scale = d ** -0.5
    cdt = x.dtype                      # compute dtype (bf16 in -> bf16 MXU)

    # ---- one-time wrapper-side weight prep (free relative to the kernel) ----
    # w_qkv column index is  h*(d*3) + d_idx*3 + {0:q, 1:k, 2:v}; regroup into
    # head-major q|k|v slabs so a single (N,D)x(D,3D) matmul yields per-head
    # columns [h*d:(h+1)*d] inside each of the q / k / v thirds.
    wr = w_qkv.reshape(D, H, d, 3)
    wq = wr[..., 0].reshape(D, D) * scale          # fold softmax scale into Wq
    wk = wr[..., 1].reshape(D, D)
    wv = wr[..., 2].reshape(D, D)
    w_qkv_hm = jnp.concatenate([wq, wk, wv], axis=1).astype(cdt)      # (D, 3D)
    br = b_qkv.reshape(H, d, 3)
    b_qkv_hm = jnp.concatenate(
        [br[..., 0].reshape(D) * scale,            # fold scale into bq too
         br[..., 1].reshape(D),
         br[..., 2].reshape(D)]).reshape(1, 3 * D).astype(jnp.float32)
    wp = w_proj.astype(cdt)                                           # (D, D)
    bp = b_proj.reshape(1, D).astype(jnp.float32)

    def kernel(x_ref, wqkv_ref, bqkv_ref, wp_ref, bp_ref,
               attn_ref, out_ref, qkv_sc, ctx_sc):
        xb = x_ref[0]                                   # (N, D), compute dtype
        # One full-width QKV projection for all heads (lane-dense MXU matmul).
        qkv_sc[...] = (
            jnp.dot(xb, wqkv_ref[...], preferred_element_type=jnp.float32)
            + bqkv_ref[...]).astype(qkv_sc.dtype)
        # Static head loop; every iteration only talks through refs, so no
        # value is carried live across heads (no spill from an unrolled acc).
        for h in range(H):
            lo, hi = h * d, (h + 1) * d
            q = qkv_sc[:, lo:hi]                        # already scaled
            k = qkv_sc[:, D + lo:D + hi]
            v = qkv_sc[:, 2 * D + lo:2 * D + hi]
            s = jnp.einsum("nd,md->nm", q, k,
                           preferred_element_type=jnp.float32)        # (N, N)
            s = s - jnp.max(s, axis=-1, keepdims=True)
            p = jnp.exp(s)                              # EUP slot
            inv = pl.reciprocal(jnp.sum(p, axis=-1, keepdims=True))   # (N, 1)
            p = p * inv                                 # cheap VPU mul, no divide
            # TODO(synk): attn_dropout with p>0 in training mode would use
            # pltpu.prng_seed / pltpu.prng_random_bits here; p=0 is identity.
            attn_ref[0, h] = p.astype(attn_ref.dtype)
            ctx_sc[:, lo:hi] = jnp.dot(
                p.astype(v.dtype), v,
                preferred_element_type=jnp.float32).astype(ctx_sc.dtype)
        # One full-width output projection (contraction K = D, not d).
        # proj_dropout(p=0) is identity.
        out_ref[0] = (jnp.dot(ctx_sc[...], wp_ref[...],
                              preferred_element_type=jnp.float32)
                      + bp_ref[...]).astype(out_ref.dtype)

    # --- advisory cost estimate for XLA scheduling around the custom call ---
    flops = int(B * (8 * N * D * D + 4 * N * N * D))
    transcendentals = int(B * H * (N * N + N))
    bytes_accessed = int(
        (x.size + B * N * D + B * H * N * N) * x.dtype.itemsize
        + (w_qkv.size + b_qkv.size + w_proj.size + b_proj.size)
        * w_qkv.dtype.itemsize)

    # --- VMEM budget: real footprint + headroom, never the full v7x 64 MiB ---
    isz = jnp.dtype(cdt).itemsize
    block_bytes = (
        2 * N * D * isz                        # x block (double-buffered)
        + 2 * N * D * isz                      # out block
        + 2 * H * N * N * isz                  # attn block
        + 2 * (3 * D * D + D * D) * isz        # resident weights (dbl-buffered)
        + 2 * (3 * D + D) * 4                  # f32 biases
        + (3 * N * D + N * D) * isz            # qkv / ctx scratch (single)
        + 2 * N * N * 4)                       # per-head f32 s/p intermediates
    vmem_limit = int(min(max(1.25 * block_bytes + (4 << 20), 32 << 20), 56 << 20))

    attn, out = pl.pallas_call(
        kernel,
        out_shape=(
            jax.ShapeDtypeStruct((B, H, N, N), cdt),   # attention weights
            jax.ShapeDtypeStruct((B, N, D), cdt),      # projected output
        ),
        grid_spec=pltpu.PrefetchScalarGridSpec(
            num_scalar_prefetch=0,
            grid=(B,),
            in_specs=[
                pl.BlockSpec((1, N, D), lambda b: (b, 0, 0)),     # x (per batch)
                pl.BlockSpec((D, 3 * D), lambda b: (0, 0)),       # Wqkv (resident)
                pl.BlockSpec((1, 3 * D), lambda b: (0, 0)),       # bqkv
                pl.BlockSpec((D, D), lambda b: (0, 0)),           # Wproj
                pl.BlockSpec((1, D), lambda b: (0, 0)),           # bproj
            ],
            out_specs=(
                pl.BlockSpec((1, H, N, N), lambda b: (b, 0, 0, 0)),
                pl.BlockSpec((1, N, D), lambda b: (b, 0, 0)),
            ),
            scratch_shapes=[
                pltpu.VMEM((N, 3 * D), cdt),   # head-major q|k|v for this batch
                pltpu.VMEM((N, D), cdt),       # head-major concatenated context
            ],
        ),
        compiler_params=pltpu.CompilerParams(
            dimension_semantics=("parallel",),          # megacore / 2-TC v7x
            vmem_limit_bytes=vmem_limit,
        ),
        cost_estimate=pl.CostEstimate(
            flops=flops,
            transcendentals=transcendentals,
            bytes_accessed=bytes_accessed,
        ),
    )(x, w_qkv_hm, b_qkv_hm, wp, bp)

    return out, attn


def mha_reference(x, w_qkv, b_qkv, w_proj, b_proj, num_heads):
    B, N, D = x.shape
    d = D // num_heads
    qkv = jnp.einsum("bnd,de->bne", x, w_qkv) + b_qkv           # (B, N, 3D)
    qkv = qkv.reshape(B, N, num_heads, d, 3)                    # '(h d qkv)'
    q = jnp.transpose(qkv[..., 0], (0, 2, 1, 3))                # (B, H, N, d)
    k = jnp.transpose(qkv[..., 1], (0, 2, 1, 3))
    v = jnp.transpose(qkv[..., 2], (0, 2, 1, 3))
    attn = jax.nn.softmax(
        jnp.einsum("bhnd,bhmd->bhnm", q, k) * (d ** -0.5), axis=-1)
    ctx = jnp.einsum("bhnm,bhmd->bhnd", attn, v)
    ctx = jnp.transpose(ctx, (0, 2, 1, 3)).reshape(B, N, D)     # 'b n (h d)'
    out = jnp.einsum("bnd,de->bne", ctx, w_proj) + b_proj
    return out, attn


if __name__ == "__main__":
    key = jax.random.PRNGKey(0)
    B, N, D, H = 2, 16, 64, 4          # batch, tokens, embed_dim, num_heads

    k_x, k_wqkv, k_bqkv, k_wp, k_bp = jax.random.split(key, 5)
    x = jax.random.normal(k_x, (B, N, D), dtype=jnp.float32)

    # xavier_uniform limits (weights stored transposed vs. PyTorch: (in, out)).
    lim_qkv = math.sqrt(6.0 / (D + 3 * D))
    lim_p = math.sqrt(6.0 / (D + D))
    w_qkv = jax.random.uniform(k_wqkv, (D, 3 * D), minval=-lim_qkv,
                               maxval=lim_qkv, dtype=jnp.float32)
    w_proj = jax.random.uniform(k_wp, (D, D), minval=-lim_p, maxval=lim_p,
                                dtype=jnp.float32)
    # PyTorch init zeros the biases; use small random biases here so the
    # bias-add path is actually exercised (forward semantics are identical).
    b_qkv = 0.01 * jax.random.normal(k_bqkv, (3 * D,), dtype=jnp.float32)
    b_proj = 0.01 * jax.random.normal(k_bp, (D,), dtype=jnp.float32)

    out, attn = mha_pallas(x, w_qkv, b_qkv, w_proj, b_proj, num_heads=H)
    out = jax.block_until_ready(out)
    attn = jax.block_until_ready(attn)

    ref_out, ref_attn = mha_reference(x, w_qkv, b_qkv, w_proj, b_proj, H)
    assert out.shape == (B, N, D)
    assert attn.shape == (B, H, N, N)
    assert jnp.allclose(attn, ref_attn, atol=1e-5, rtol=1e-5), "attn mismatch"
    assert jnp.allclose(out, ref_out, atol=1e-4, rtol=1e-4), "output mismatch"

    print("KERNEL_OK")
</pallas_src>

<mosaic_0001>
module attributes {stable_mosaic.version = 11 : i64} {
  func.func @kernel(%arg0: i32, %arg1: memref<1x16x64xf32, #tpu.memory_space<vmem>>, %arg2: memref<64x192xf32, #tpu.memory_space<vmem>>, %arg3: memref<1x192xf32, #tpu.memory_space<vmem>>, %arg4: memref<64x64xf32, #tpu.memory_space<vmem>>, %arg5: memref<1x64xf32, #tpu.memory_space<vmem>>, %arg6: memref<1x4x16x16xf32, #tpu.memory_space<vmem>>, %arg7: memref<1x16x64xf32, #tpu.memory_space<vmem>>, %arg8: memref<16x192xf32, #tpu.memory_space<vmem>>, %arg9: memref<16x64xf32, #tpu.memory_space<vmem>>) attributes {dimension_semantics = [#tpu.dimension_semantics<parallel>], iteration_bounds = array<i64: 2>, scalar_prefetch = 0 : i64, scratch_operands = 2 : i64, tpu.core_type = #tpu.core_type<tc>, window_params = [{transform_indices = @transform_0, window_bounds = array<i64: 1, 16, 64>}, {pipeline_mode = #tpu.pipeline_mode<synchronous>, transform_indices = @transform_1, window_bounds = array<i64: 64, 192>}, {pipeline_mode = #tpu.pipeline_mode<synchronous>, transform_indices = @transform_2, window_bounds = array<i64: 1, 192>}, {pipeline_mode = #tpu.pipeline_mode<synchronous>, transform_indices = @transform_3, window_bounds = array<i64: 64, 64>}, {pipeline_mode = #tpu.pipeline_mode<synchronous>, transform_indices = @transform_4, window_bounds = array<i64: 1, 64>}, {transform_indices = @transform_5, window_bounds = array<i64: 1, 4, 16, 16>}, {transform_indices = @transform_6, window_bounds = array<i64: 1, 16, 64>}]} {
    %c0 = arith.constant 0 : index
    %c0_0 = arith.constant 0 : index
    %c0_1 = arith.constant 0 : index
    %0 = vector.load %arg1[%c0, %c0_0, %c0_1] : memref<1x16x64xf32, #tpu.memory_space<vmem>>, vector<1x16x64xf32>
    %1 = vector.shape_cast %0 : vector<1x16x64xf32> to vector<16x64xf32>
    %c0_2 = arith.constant 0 : index
    %c0_3 = arith.constant 0 : index
    %2 = vector.load %arg2[%c0_2, %c0_3] : memref<64x192xf32, #tpu.memory_space<vmem>>, vector<64x192xf32>
    %cst = arith.constant dense<0.000000e+00> : vector<16x192xf32>
    %3 = tpu.matmul %1, %2, %cst {dimension_numbers = #tpu.dot_dimension_numbers<[1], [0], [0], [1], [0, 0, 1, 1], [], []>} : vector<16x64xf32>, vector<64x192xf32>, vector<16x192xf32> -> vector<16x192xf32>
    %c0_4 = arith.constant 0 : index
    %c0_5 = arith.constant 0 : index
    %4 = vector.load %arg3[%c0_4, %c0_5] : memref<1x192xf32, #tpu.memory_space<vmem>>, vector<1x192xf32>
    %5 = vector.broadcast %4 : vector<1x192xf32> to vector<16x192xf32>
    %6 = arith.addf %3, %5 : vector<16x192xf32>
    %c0_6 = arith.constant 0 : index
    %c0_7 = arith.constant 0 : index
    %7 = vector.load %arg8[%c0_6, %c0_7] : memref<16x192xf32, #tpu.memory_space<vmem>>, vector<16x192xf32>
    tpu.vector_store %arg8[%c0_6, %c0_7], %6 {strides = array<i32>} : memref<16x192xf32, #tpu.memory_space<vmem>>, vector<16x192xf32>,
    %c0_8 = arith.constant 0 : index
    %c0_9 = arith.constant 0 : index
    %8 = vector.load %arg8[%c0_8, %c0_9] : memref<16x192xf32, #tpu.memory_space<vmem>>, vector<16x16xf32>
    %c0_10 = arith.constant 0 : index
    %c64 = arith.constant 64 : index
    %9 = vector.load %arg8[%c0_10, %c64] : memref<16x192xf32, #tpu.memory_space<vmem>>, vector<16x16xf32>
    %c0_11 = arith.constant 0 : index
    %c128 = arith.constant 128 : index
    %10 = vector.load %arg8[%c0_11, %c128] : memref<16x192xf32, #tpu.memory_space<vmem>>, vector<16x16xf32>
    "tpu.trace_start"() <{level = 10 : i32, message = "nd,md->nm"}> : () -> ()
    %cst_12 = arith.constant dense<0.000000e+00> : vector<16x16xf32>
    %11 = tpu.matmul %8, %9, %cst_12 {dimension_numbers = #tpu.dot_dimension_numbers<[1], [1], [0], [0], [0, 0, 1, 0], [], []>} : vector<16x16xf32>, vector<16x16xf32>, vector<16x16xf32> -> vector<16x16xf32>
    "tpu.trace_stop"() : () -> ()
    %cst_13 = arith.constant dense<0xFF800000> : vector<16xf32>
    %12 = vector.multi_reduction <maximumf>, %11, %cst_13 [1] : vector<16x16xf32> to vector<16xf32>
    %13 = vector.shape_cast %12 : vector<16xf32> to vector<16x1xf32>
    %14 = vector.broadcast %13 : vector<16x1xf32> to vector<16x16xf32>
    %15 = arith.subf %11, %14 : vector<16x16xf32>
    %16 = math.exp %15 : vector<16x16xf32>
    %cst_14 = arith.constant dense<0.000000e+00> : vector<16xf32>
    %17 = vector.multi_reduction <add>, %16, %cst_14 [1] : vector<16x16xf32> to vector<16xf32>
    %18 = vector.shape_cast %17 : vector<16xf32> to vector<16x1xf32>
    %19 = tpu.reciprocal %18 : vector<16x1xf32> -> vector<16x1xf32>
    %20 = vector.broadcast %19 : vector<16x1xf32> to vector<16x16xf32>
    %21 = arith.mulf %16, %20 : vector<16x16xf32>
    %c0_15 = arith.constant 0 : index
    %c0_16 = arith.constant 0 : index
    %c0_17 = arith.constant 0 : index
    %c0_18 = arith.constant 0 : index
    %22 = vector.load %arg6[%c0_15, %c0_16, %c0_17, %c0_18] : memref<1x4x16x16xf32, #tpu.memory_space<vmem>>, vector<1x1x16x16xf32>
    %23 = vector.shape_cast %22 : vector<1x1x16x16xf32> to vector<16x16xf32>
    %24 = vector.shape_cast %21 : vector<16x16xf32> to vector<1x1x16x16xf32>
    tpu.vector_store %arg6[%c0_15, %c0_16, %c0_17, %c0_18], %24 {strides = array<i32>} : memref<1x4x16x16xf32, #tpu.memory_space<vmem>>, vector<1x1x16x16xf32>,
    %cst_19 = arith.constant dense<0.000000e+00> : vector<16x16xf32>
    %25 = tpu.matmul %21, %10, %cst_19 {dimension_numbers = #tpu.dot_dimension_numbers<[1], [0], [0], [1], [0, 0, 1, 1], [], []>} : vector<16x16xf32>, vector<16x16xf32>, vector<16x16xf32> -> vector<16x16xf32>
    %c0_20 = arith.constant 0 : index
    %c0_21 = arith.constant 0 : index
    %26 = vector.load %arg9[%c0_20, %c0_21] : memref<16x64xf32, #tpu.memory_space<vmem>>, vector<16x16xf32>
    tpu.vector_store %arg9[%c0_20, %c0_21], %25 {strides = array<i32>} : memref<16x64xf32, #tpu.memory_space<vmem>>, vector<16x16xf32>,
    %c0_22 = arith.constant 0 : index
    %c16 = arith.constant 16 : index
    %27 = vector.load %arg8[%c0_22, %c16] : memref<16x192xf32, #tpu.memory_space<vmem>>, vector<16x16xf32>
    %c0_23 = arith.constant 0 : index
    %c80 = arith.constant 80 : index
    %28 = vector.load %arg8[%c0_23, %c80] : memref<16x192xf32, #tpu.memory_space<vmem>>, vector<16x16xf32>
    %c0_24 = arith.constant 0 : index
    %c144 = arith.constant 144 : index
    %29 = vector.load %arg8[%c0_24, %c144] : memref<16x192xf32, #tpu.memory_space<vmem>>, vector<16x16xf32>
    "tpu.trace_start"() <{level = 10 : i32, message = "nd,md->nm"}> : () -> ()
    %cst_25 = arith.constant dense<0.000000e+00> : vector<16x16xf32>
    %30 = tpu.matmul %27, %28, %cst_25 {dimension_numbers = #tpu.dot_dimension_numbers<[1], [1], [0], [0], [0, 0, 1, 0], [], []>} : vector<16x16xf32>, vector<16x16xf32>, vector<16x16xf32> -> vector<16x16xf32>
    "tpu.trace_stop"() : () -> ()
    %cst_26 = arith.constant dense<0xFF800000> : vector<16xf32>
    %31 = vector.multi_reduction <maximumf>, %30, %cst_26 [1] : vector<16x16xf32> to vector<16xf32>
    %32 = vector.shape_cast %31 : vector<16xf32> to vector<16x1xf32>
    %33 = vector.broadcast %32 : vector<16x1xf32> to vector<16x16xf32>
    %34 = arith.subf %30, %33 : vector<16x16xf32>
    %35 = math.exp %34 : vector<16x16xf32>
    %cst_27 = arith.constant dense<0.000000e+00> : vector<16xf32>
    %36 = vector.multi_reduction <add>, %35, %cst_27 [1] : vector<16x16xf32> to vector<16xf32>
    %37 = vector.shape_cast %36 : vector<16xf32> to vector<16x1xf32>
    %38 = tpu.reciprocal %37 : vector<16x1xf32> -> vector<16x1xf32>
    %39 = vector.broadcast %38 : vector<16x1xf32> to vector<16x16xf32>
    %40 = arith.mulf %35, %39 : vector<16x16xf32>
    %c0_28 = arith.constant 0 : index
    %c1 = arith.constant 1 : index
    %c0_29 = arith.constant 0 : index
    %c0_30 = arith.constant 0 : index
    %41 = vector.load %arg6[%c0_28, %c1, %c0_29, %c0_30] : memref<1x4x16x16xf32, #tpu.memory_space<vmem>>, vector<1x1x16x16xf32>
    %42 = vector.shape_cast %41 : vector<1x1x16x16xf32> to vector<16x16xf32>
    %43 = vector.shape_cast %40 : vector<16x16xf32> to vector<1x1x16x16xf32>
    tpu.vector_store %arg6[%c0_28, %c1, %c0_29, %c0_30], %43 {strides = array<i32>} : memref<1x4x16x16xf32, #tpu.memory_space<vmem>>, vector<1x1x16x16xf32>,
    %cst_31 = arith.constant dense<0.000000e+00> : vector<16x16xf32>
    %44 = tpu.matmul %40, %29, %cst_31 {dimension_numbers = #tpu.dot_dimension_numbers<[1], [0], [0], [1], [0, 0, 1, 1], [], []>} : vector<16x16xf32>, vector<16x16xf32>, vector<16x16xf32> -> vector<16x16xf32>
    %c0_32 = arith.constant 0 : index
    %c16_33 = arith.constant 16 : index
    %45 = vector.load %arg9[%c0_32, %c16_33] : memref<16x64xf32, #tpu.memory_space<vmem>>, vector<16x16xf32>
    tpu.vector_store %arg9[%c0_32, %c16_33], %44 {strides = array<i32>} : memref<16x64xf32, #tpu.memory_space<vmem>>, vector<16x16xf32>,
    %c0_34 = arith.constant 0 : index
    %c32 = arith.constant 32 : index
    %46 = vector.load %arg8[%c0_34, %c32] : memref<16x192xf32, #tpu.memory_space<vmem>>, vector<16x16xf32>
    %c0_35 = arith.constant 0 : index
    %c96 = arith.constant 96 : index
    %47 = vector.load %arg8[%c0_35, %c96] : memref<16x192xf32, #tpu.memory_space<vmem>>, vector<16x16xf32>
    %c0_36 = arith.constant 0 : index
    %c160 = arith.constant 160 : index
    %48 = vector.load %arg8[%c0_36, %c160] : memref<16x192xf32, #tpu.memory_space<vmem>>, vector<16x16xf32>
    "tpu.trace_start"() <{level = 10 : i32, message = "nd,md->nm"}> : () -> ()
    %cst_37 = arith.constant dense<0.000000e+00> : vector<16x16xf32>
    %49 = tpu.matmul %46, %47, %cst_37 {dimension_numbers = #tpu.dot_dimension_numbers<[1], [1], [0], [0], [0, 0, 1, 0], [], []>} : vector<16x16xf32>, vector<16x16xf32>, vector<16x16xf32> -> vector<16x16xf32>
    "tpu.trace_stop"() : () -> ()
    %cst_38 = arith.constant dense<0xFF800000> : vector<16xf32>
    %50 = vector.multi_reduction <maximumf>, %49, %cst_38 [1] : vector<16x16xf32> to vector<16xf32>
    %51 = vector.shape_cast %50 : vector<16xf32> to vector<16x1xf32>
    %52 = vector.broadcast %51 : vector<16x1xf32> to vector<16x16xf32>
    %53 = arith.subf %49, %52 : vector<16x16xf32>
    %54 = math.exp %53 : vector<16x16xf32>
    %cst_39 = arith.constant dense<0.000000e+00> : vector<16xf32>
    %55 = vector.multi_reduction <add>, %54, %cst_39 [1] : vector<16x16xf32> to vector<16xf32>
    %56 = vector.shape_cast %55 : vector<16xf32> to vector<16x1xf32>
    %57 = tpu.reciprocal %56 : vector<16x1xf32> -> vector<16x1xf32>
    %58 = vector.broadcast %57 : vector<16x1xf32> to vector<16x16xf32>
    %59 = arith.mulf %54, %58 : vector<16x16xf32>
    %c0_40 = arith.constant 0 : index
    %c2 = arith.constant 2 : index
    %c0_41 = arith.constant 0 : index
    %c0_42 = arith.constant 0 : index
    %60 = vector.load %arg6[%c0_40, %c2, %c0_41, %c0_42] : memref<1x4x16x16xf32, #tpu.memory_space<vmem>>, vector<1x1x16x16xf32>
    %61 = vector.shape_cast %60 : vector<1x1x16x16xf32> to vector<16x16xf32>
    %62 = vector.shape_cast %59 : vector<16x16xf32> to vector<1x1x16x16xf32>
    tpu.vector_store %arg6[%c0_40, %c2, %c0_41, %c0_42], %62 {strides = array<i32>} : memref<1x4x16x16xf32, #tpu.memory_space<vmem>>, vector<1x1x16x16xf32>,
    %cst_43 = arith.constant dense<0.000000e+00> : vector<16x16xf32>
    %63 = tpu.matmul %59, %48, %cst_43 {dimension_numbers = #tpu.dot_dimension_numbers<[1], [0], [0], [1], [0, 0, 1, 1], [], []>} : vector<16x16xf32>, vector<16x16xf32>, vector<16x16xf32> -> vector<16x16xf32>
    %c0_44 = arith.constant 0 : index
    %c32_45 = arith.constant 32 : index
    %64 = vector.load %arg9[%c0_44, %c32_45] : memref<16x64xf32, #tpu.memory_space<vmem>>, vector<16x16xf32>
    tpu.vector_store %arg9[%c0_44, %c32_45], %63 {strides = array<i32>} : memref<16x64xf32, #tpu.memory_space<vmem>>, vector<16x16xf32>,
    %c0_46 = arith.constant 0 : index
    %c48 = arith.constant 48 : index
    %65 = vector.load %arg8[%c0_46, %c48] : memref<16x192xf32, #tpu.memory_space<vmem>>, vector<16x16xf32>
    %c0_47 = arith.constant 0 : index
    %c112 = arith.constant 112 : index
    %66 = vector.load %arg8[%c0_47, %c112] : memref<16x192xf32, #tpu.memory_space<vmem>>, vector<16x16xf32>
    %c0_48 = arith.constant 0 : index
    %c176 = arith.constant 176 : index
    %67 = vector.load %arg8[%c0_48, %c176] : memref<16x192xf32, #tpu.memory_space<vmem>>, vector<16x16xf32>
    "tpu.trace_start"() <{level = 10 : i32, message = "nd,md->nm"}> : () -> ()
    %cst_49 = arith.constant dense<0.000000e+00> : vector<16x16xf32>
    %68 = tpu.matmul %65, %66, %cst_49 {dimension_numbers = #tpu.dot_dimension_numbers<[1], [1], [0], [0], [0, 0, 1, 0], [], []>} : vector<16x16xf32>, vector<16x16xf32>, vector<16x16xf32> -> vector<16x16xf32>
    "tpu.trace_stop"() : () -> ()
    %cst_50 = arith.constant dense<0xFF800000> : vector<16xf32>
    %69 = vector.multi_reduction <maximumf>, %68, %cst_50 [1] : vector<16x16xf32> to vector<16xf32>
    %70 = vector.shape_cast %69 : vector<16xf32> to vector<16x1xf32>
    %71 = vector.broadcast %70 : vector<16x1xf32> to vector<16x16xf32>
    %72 = arith.subf %68, %71 : vector<16x16xf32>
    %73 = math.exp %72 : vector<16x16xf32>
    %cst_51 = arith.constant dense<0.000000e+00> : vector<16xf32>
    %74 = vector.multi_reduction <add>, %73, %cst_51 [1] : vector<16x16xf32> to vector<16xf32>
    %75 = vector.shape_cast %74 : vector<16xf32> to vector<16x1xf32>
    %76 = tpu.reciprocal %75 : vector<16x1xf32> -> vector<16x1xf32>
    %77 = vector.broadcast %76 : vector<16x1xf32> to vector<16x16xf32>
    %78 = arith.mulf %73, %77 : vector<16x16xf32>
    %c0_52 = arith.constant 0 : index
    %c3 = arith.constant 3 : index
    %c0_53 = arith.constant 0 : index
    %c0_54 = arith.constant 0 : index
    %79 = vector.load %arg6[%c0_52, %c3, %c0_53, %c0_54] : memref<1x4x16x16xf32, #tpu.memory_space<vmem>>, vector<1x1x16x16xf32>
    %80 = vector.shape_cast %79 : vector<1x1x16x16xf32> to vector<16x16xf32>
    %81 = vector.shape_cast %78 : vector<16x16xf32> to vector<1x1x16x16xf32>
    tpu.vector_store %arg6[%c0_52, %c3, %c0_53, %c0_54], %81 {strides = array<i32>} : memref<1x4x16x16xf32, #tpu.memory_space<vmem>>, vector<1x1x16x16xf32>,
    %cst_55 = arith.constant dense<0.000000e+00> : vector<16x16xf32>
    %82 = tpu.matmul %78, %67, %cst_55 {dimension_numbers = #tpu.dot_dimension_numbers<[1], [0], [0], [1], [0, 0, 1, 1], [], []>} : vector<16x16xf32>, vector<16x16xf32>, vector<16x16xf32> -> vector<16x16xf32>
    %c0_56 = arith.constant 0 : index
    %c48_57 = arith.constant 48 : index
    %83 = vector.load %arg9[%c0_56, %c48_57] : memref<16x64xf32, #tpu.memory_space<vmem>>, vector<16x16xf32>
    tpu.vector_store %arg9[%c0_56, %c48_57], %82 {strides = array<i32>} : memref<16x64xf32, #tpu.memory_space<vmem>>, vector<16x16xf32>,
    %c0_58 = arith.constant 0 : index
    %c0_59 = arith.constant 0 : index
    %84 = vector.load %arg9[%c0_58, %c0_59] : memref<16x64xf32, #tpu.memory_space<vmem>>, vector<16x64xf32>
    %c0_60 = arith.constant 0 : index
    %c0_61 = arith.constant 0 : index
    %85 = vector.load %arg4[%c0_60, %c0_61] : memref<64x64xf32, #tpu.memory_space<vmem>>, vector<64x64xf32>
    %cst_62 = arith.constant dense<0.000000e+00> : vector<16x64xf32>
    %86 = tpu.matmul %84, %85, %cst_62 {dimension_numbers = #tpu.dot_dimension_numbers<[1], [0], [0], [1], [0, 0, 1, 1], [], []>} : vector<16x64xf32>, vector<64x64xf32>, vector<16x64xf32> -> vector<16x64xf32>
    %c0_63 = arith.constant 0 : index
    %c0_64 = arith.constant 0 : index
    %87 = vector.load %arg5[%c0_63, %c0_64] : memref<1x64xf32, #tpu.memory_space<vmem>>, vector<1x64xf32>
    %88 = vector.broadcast %87 : vector<1x64xf32> to vector<16x64xf32>
    %89 = arith.addf %86, %88 : vector<16x64xf32>
    %c0_65 = arith.constant 0 : index
    %c0_66 = arith.constant 0 : index
    %c0_67 = arith.constant 0 : index
    %90 = vector.load %arg7[%c0_65, %c0_66, %c0_67] : memref<1x16x64xf32, #tpu.memory_space<vmem>>, vector<1x16x64xf32>
    %91 = vector.shape_cast %90 : vector<1x16x64xf32> to vector<16x64xf32>
    %92 = vector.shape_cast %89 : vector<16x64xf32> to vector<1x16x64xf32>
    tpu.vector_store %arg7[%c0_65, %c0_66, %c0_67], %92 {strides = array<i32>} : memref<1x16x64xf32, #tpu.memory_space<vmem>>, vector<1x16x64xf32>,
    return
  }
  func.func @transform_0(%arg0: i32) -> (i32, i32, i32) {
    %c0_i32 = arith.constant 0 : i32
    %c0_i32_0 = arith.constant 0 : i32
    %c0_i32_1 = arith.constant 0 : i32
    return %arg0, %c0_i32, %c0_i32_0 : i32, i32, i32
  }
  func.func @transform_1(%arg0: i32) -> (i32, i32) {
    %c0_i32 = arith.constant 0 : i32
    %c0_i32_0 = arith.constant 0 : i32
    %c0_i32_1 = arith.constant 0 : i32
    return %c0_i32, %c0_i32_0 : i32, i32
  }
  func.func @transform_2(%arg0: i32) -> (i32, i32) {
    %c0_i32 = arith.constant 0 : i32
    %c0_i32_0 = arith.constant 0 : i32
    %c0_i32_1 = arith.constant 0 : i32
    return %c0_i32, %c0_i32_0 : i32, i32
  }
  func.func @transform_3(%arg0: i32) -> (i32, i32) {
    %c0_i32 = arith.constant 0 : i32
    %c0_i32_0 = arith.constant 0 : i32
    %c0_i32_1 = arith.constant 0 : i32
    return %c0_i32, %c0_i32_0 : i32, i32
  }
  func.func @transform_4(%arg0: i32) -> (i32, i32) {
    %c0_i32 = arith.constant 0 : i32
    %c0_i32_0 = arith.constant 0 : i32
    %c0_i32_1 = arith.constant 0 : i32
    return %c0_i32, %c0_i32_0 : i32, i32
  }
  func.func @transform_5(%arg0: i32) -> (i32, i32, i32, i32) {
    %c0_i32 = arith.constant 0 : i32
    %c0_i32_0 = arith.constant 0 : i32
    %c0_i32_1 = arith.constant 0 : i32
    %c0_i32_2 = arith.constant 0 : i32
    return %arg0, %c0_i32, %c0_i32_0, %c0_i32_1 : i32, i32, i32, i32
  }
  func.func @transform_6(%arg0: i32) -> (i32, i32, i32) {
    %c0_i32 = arith.constant 0 : i32
    %c0_i32_0 = arith.constant 0 : i32
    %c0_i32_1 = arith.constant 0 : i32
    return %arg0, %c0_i32, %c0_i32_0 : i32, i32, i32
  }
}

</mosaic_0001>

<llo_original>
// kernel: tpu_custom_call.1
$region0: #{tpu_custom_call.1}
  #allocation0 [shape = 'u32[]', space=smem, size = 0x4, offset = 0x4, fixed_abs, tag = 'smem constant byte address 0x4 - core index']
  #allocation1 [shape = 'u32[144,128]{1,0:T(1,128)}', space=vmem, size = 0x12000, scoped, tag = 'internal scratch']
  #allocation2 [shape = 'f32[16,192]{1,0:T(8,128)}', space=vmem, size = 0x4000, scoped, tag = 'scratch operand']
  #allocation3 [shape = 'f32[16,64]{1,0:T(8,128)}', space=vmem, size = 0x2000, scoped, tag = 'scratch operand']
  %s0 = inlined_call_operand.hbm [shape: f32[2,16,64], index: 0, kind: input, shape index: {}]
  %s1 = inlined_call_operand.hbm [shape: f32[64,192], index: 1, kind: input, shape index: {}]
  %s2 = inlined_call_operand.vmem [shape: f32[1,192], index: 2, kind: input, shape index: {}]
  %s3 = inlined_call_operand.hbm [shape: f32[64,64], index: 3, kind: input, shape index: {}]
  %s4 = inlined_call_operand.vmem [shape: f32[1,64], index: 4, kind: input, shape index: {}]
  %s5 = inlined_call_operand.hbm [shape: f32[2,4,16,16], index: 5, kind: output, shape index: {0}]
  %s6 = inlined_call_operand.hbm [shape: f32[2,16,64], index: 6, kind: output, shape index: {1}]
  %7 = xla_tuple %s5, %s6
  %s8 = sld [smem:[#allocation0]]
  $region73: #{tpu_custom_call.1} parent=0
    _
  %s10 = ssub.s32 1, %s8
  %s11 = scalar_select 0, %s10, %s8
  $region1: #{tpu_custom_call.1} parent=0
    #allocation4 [shape = 'u8[16384]{0}', space=vmem, size = 0x4000, scoped, tag = 'input window, operand 0']
    #allocation5 [shape = 's32[2]{0}', space=sflag, size = 0x8, scoped, tag = 'scoped memory for tpu_custom_call.1']
    #allocation6 [shape = 's32[2]{0}', space=sflag, size = 0x8, scoped, tag = 'scoped memory for tpu_custom_call.1']
    #allocation7 [shape = 'u8[65536]{0}', space=vmem, size = 0x10000, scoped, tag = 'input window, operand 1, single buffered']
    #allocation8 [shape = 's32[1]{0}', space=sflag, size = 0x4, scoped, tag = 'scoped memory for tpu_custom_call.1']
    #allocation9 [shape = 'u8[32768]{0}', space=vmem, size = 0x8000, scoped, tag = 'input window, operand 3, single buffered']
    #allocation10 [shape = 'u8[65536]{0}', space=vmem, size = 0x10000, scoped, tag = 'output window, operand 0']
    #allocation11 [shape = 'u8[16384]{0}', space=vmem, size = 0x4000, scoped, tag = 'output window, operand 1']
    #allocation12 [shape = 's32[2]{0}', space=sflag, size = 0x8, scoped, tag = 'scoped memory for tpu_custom_call.1']
    %12 = vsyncpa [#allocation5], 0
    %s13 = scalar_lea.sflag [#allocation5], 1
    %14 = vsyncpa %s13, 0
    %15 = vsyncpa [#allocation8], 0
    %16 = vsyncpa [#allocation6], 0
    %s17 = scalar_lea.sflag [#allocation6], 1
    %18 = vsyncpa %s17, 0
    %19 = vsyncpa [#allocation12], 0
    %s20 = scalar_lea.sflag [#allocation12], 1
    %21 = vsyncpa %s20, 0
    loop: start=0, step=1, limit=4
    $region2: #{tpu_custom_call.1} parent=1 // loop_pre_header
      _
    $region3: #{tpu_custom_call.1} parent=1 // loop_header
      %s23 = sphi 0, %s27
      %p24 = scmp.ge.s32.totalorder %s23, 4
      %s33 = sphi 0, %s35
      %s36 = sphi 0, %s33
      %s37 = sphi 0, %s36
      %s53 = sphi 0, %s37
      %s57 = sphi 0, %s57
      %s59 = sphi 0, %s57
      %s60 = sphi 0, %s59
      %s74 = sphi 0, %s60
      %s78 = sphi 0, %s78
      %s80 = sphi 0, %s78
      %s81 = sphi 0, %s80
      %s95 = sphi 0, %s81
      %s99 = sphi 0, %s99
      %s101 = sphi 0, %s99
      %s102 = sphi 0, %s101
      %s116 = sphi 0, %s102
      %s120 = sphi 0, %s120
      %s122 = sphi 0, %s120
      %s123 = sphi 0, %s122
      %s137 = sphi 0, %s123
      %s143 = sphi 0, %s145
      %s146 = sphi 0, %s143
      %s147 = sphi 0, %s146
      %s163 = sphi 0, %s147
      %s169 = sphi 0, %s171
      %s172 = sphi 0, %s169
      %s173 = sphi 0, %s172
      %s189 = sphi 0, %s173
    $region4: #{tpu_custom_call.1} parent=1 // loop_header_branch
      %26 = sbr.rel (%p24) target = $region8
    $region5: #{tpu_custom_call.1} parent=1 // loop_body
      %s28 = ssub.s32 %s23, 1
      %s29 = ssub.s32 %s23, 2
      %s30 = sadd.s32 %s23, 1
      %s31 = ssub.s32 %s23, %s30
      %p32 = scmp.eq.s32.totalorder %s31, 0
      %s34 = sadd.s32 %s33, 1
      %s35 = scalar_select %p32, %s33, %s34
      %p38 = pneg %p32
      %p39 = scmp.eq.s32.totalorder %s23, 1
      %p40 = por %p38, %p39
      %p41 = scmp.ne.s32.totalorder %s33, %s36
      %p42 = scmp.eq.s32.totalorder %s23, 0
      %p43 = por %p41, %p42
      %p44 = scmp.ne.s32.totalorder %s33, %s36
      %p45 = scmp.eq.s32.totalorder %s28, 1
      %p46 = por %p44, %p45
      %p47 = scmp.ne.s32.totalorder %s36, %s37
      %p48 = scmp.eq.s32.totalorder %s28, 0
      %p49 = por %p47, %p48
      %p50 = scmp.ne.s32.totalorder %s36, %s37
      %p51 = scmp.eq.s32.totalorder %s29, 1
      %p52 = por %p50, %p51
      %p54 = scmp.ne.s32.totalorder %s37, %s53
      %p55 = scmp.eq.s32.totalorder %s29, 0
      %p56 = por %p54, %p55
      %s58 = sadd.s32 %s57, 1
      %p61 = scmp.eq.s32.totalorder %s23, 1
      %p62 = scmp.ne.s32.totalorder %s57, %s59
      %p63 = scmp.eq.s32.totalorder %s23, 0
      %p64 = por %p62, %p63
      %p65 = scmp.ne.s32.totalorder %s57, %s59
      %p66 = scmp.eq.s32.totalorder %s28, 1
      %p67 = por %p65, %p66
      %p68 = scmp.ne.s32.totalorder %s59, %s60
      %p69 = scmp.eq.s32.totalorder %s28, 0
      %p70 = por %p68, %p69
      %p71 = scmp.ne.s32.totalorder %s59, %s60
      %p72 = scmp.eq.s32.totalorder %s29, 1
      %p73 = por %p71, %p72
      %p75 = scmp.ne.s32.totalorder %s60, %s74
      %p76 = scmp.eq.s32.totalorder %s29, 0
      %p77 = por %p75, %p76
      %s79 = sadd.s32 %s78, 1
      %p82 = scmp.eq.s32.totalorder %s23, 1
      %p83 = scmp.ne.s32.totalorder %s78, %s80
      %p84 = scmp.eq.s32.totalorder %s23, 0
      %p85 = por %p83, %p84
      %p86 = scmp.ne.s32.totalorder %s78, %s80
      %p87 = scmp.eq.s32.totalorder %s28, 1
      %p88 = por %p86, %p87
      %p89 = scmp.ne.s32.totalorder %s80, %s81
      %p90 = scmp.eq.s32.totalorder %s28, 0
      %p91 = por %p89, %p90
      %p92 = scmp.ne.s32.totalorder %s80, %s81
      %p93 = scmp.eq.s32.totalorder %s29, 1
      %p94 = por %p92, %p93
      %p96 = scmp.ne.s32.totalorder %s81, %s95
      %p97 = scmp.eq.s32.totalorder %s29, 0
      %p98 = por %p96, %p97
      %s100 = sadd.s32 %s99, 1
      %p103 = scmp.eq.s32.totalorder %s23, 1
      %p104 = scmp.ne.s32.totalorder %s99, %s101
      %p105 = scmp.eq.s32.totalorder %s23, 0
      %p106 = por %p104, %p105
      %p107 = scmp.ne.s32.totalorder %s99, %s101
      %p108 = scmp.eq.s32.totalorder %s28, 1
      %p109 = por %p107, %p108
      %p110 = scmp.ne.s32.totalorder %s101, %s102
      %p111 = scmp.eq.s32.totalorder %s28, 0
      %p112 = por %p110, %p111
      %p113 = scmp.ne.s32.totalorder %s101, %s102
      %p114 = scmp.eq.s32.totalorder %s29, 1
      %p115 = por %p113, %p114
      %p117 = scmp.ne.s32.totalorder %s102, %s116
      %p118 = scmp.eq.s32.totalorder %s29, 0
      %p119 = por %p117, %p118
      %s121 = sadd.s32 %s120, 1
      %p124 = scmp.eq.s32.totalorder %s23, 1
      %p125 = scmp.ne.s32.totalorder %s120, %s122
      %p126 = scmp.eq.s32.totalorder %s23, 0
      %p127 = por %p125, %p126
      %p128 = scmp.ne.s32.totalorder %s120, %s122
      %p129 = scmp.eq.s32.totalorder %s28, 1
      %p130 = por %p128, %p129
      %p131 = scmp.ne.s32.totalorder %s122, %s123
      %p132 = scmp.eq.s32.totalorder %s28, 0
      %p133 = por %p131, %p132
      %p134 = scmp.ne.s32.totalorder %s122, %s123
      %p135 = scmp.eq.s32.totalorder %s29, 1
      %p136 = por %p134, %p135
      %p138 = scmp.ne.s32.totalorder %s123, %s137
      %p139 = scmp.eq.s32.totalorder %s29, 0
      %p140 = por %p138, %p139
      %s141 = ssub.s32 %s23, %s30
      %p142 = scmp.eq.s32.totalorder %s141, 0
      %s144 = sadd.s32 %s143, 1
      %s145 = scalar_select %p142, %s143, %s144
      %p148 = pneg %p142
      %p149 = scmp.eq.s32.totalorder %s23, 1
      %p150 = por %p148, %p149
      %p151 = scmp.ne.s32.totalorder %s143, %s146
      %p152 = scmp.eq.s32.totalorder %s23, 0
      %p153 = por %p151, %p152
      %p154 = scmp.ne.s32.totalorder %s143, %s146
      %p155 = scmp.eq.s32.totalorder %s28, 1
      %p156 = por %p154, %p155
      %p157 = scmp.ne.s32.totalorder %s146, %s147
      %p158 = scmp.eq.s32.totalorder %s28, 0
      %p159 = por %p157, %p158
      %p160 = scmp.ne.s32.totalorder %s146, %s147
      %p161 = scmp.eq.s32.totalorder %s29, 1
      %p162 = por %p160, %p161
      %p164 = scmp.ne.s32.totalorder %s147, %s163
      %p165 = scmp.eq.s32.totalorder %s29, 0
      %p166 = por %p164, %p165
      %s167 = ssub.s32 %s23, %s30
      %p168 = scmp.eq.s32.totalorder %s167, 0
      %s170 = sadd.s32 %s169, 1
      %s171 = scalar_select %p168, %s169, %s170
      %p174 = pneg %p168
      %p175 = scmp.eq.s32.totalorder %s23, 1
      %p176 = por %p174, %p175
      %p177 = scmp.ne.s32.totalorder %s169, %s172
      %p178 = scmp.eq.s32.totalorder %s23, 0
      %p179 = por %p177, %p178
      %p180 = scmp.ne.s32.totalorder %s169, %s172
      %p181 = scmp.eq.s32.totalorder %s28, 1
      %p182 = por %p180, %p181
      %p183 = scmp.ne.s32.totalorder %s172, %s173
      %p184 = scmp.eq.s32.totalorder %s28, 0
      %p185 = por %p183, %p184
      %p186 = scmp.ne.s32.totalorder %s172, %s173
      %p187 = scmp.eq.s32.totalorder %s29, 1
      %p188 = por %p186, %p187
      %p190 = scmp.ne.s32.totalorder %s173, %s189
      %p191 = scmp.eq.s32.totalorder %s29, 0
      %p192 = por %p190, %p191
      %p193 = scmp.le.s32.totalorder 1, %s23
      %p194 = scmp.lt.s32.totalorder %s23, 3
      %p195 = pnand %p193, %p194
      %p196 = pneg %p195
      // Predicated region
      $region9: #{tpu_custom_call.1} parent=5 // pred_check
        _
      $region10: #{tpu_custom_call.1} parent=5 // pred_check_branch
        %198 = sbr.rel (%p195) target = $region12
      $region11: #{tpu_custom_call.1} parent=5 // pred_region
        %s199 = ssub.s32 %s23, 1
        // Predicated region
        $region13: #{tpu_custom_call.1} parent=11 // pred_check
          %p200 = pneg %p70
        $region14: #{tpu_custom_call.1} parent=11 // pred_check_branch
          %202 = sbr.rel (%p200) target = $region16
        $region15: #{tpu_custom_call.1} parent=11 // pred_region
          %s204 = ssub.s32 2048, 2048
          %205 = vsyncadd [#allocation8], %s204
          %s206 = sshll.u32 [#allocation7], 4
          %s207 = int_to_ptr.vmem [resolvable:$true] %s206
          %212 = dma.hbm_to_vmem [thread:$0]  %s1, 2048, %s207, [#allocation8], 256, 256, 16
        $region16: #{tpu_custom_call.1} parent=11 // pred_fallthru
          _
        // Predicated region
        $region17: #{tpu_custom_call.1} parent=11 // pred_check
          %p213 = pneg %p91
        $region18: #{tpu_custom_call.1} parent=11 // pred_check_branch
          %215 = sbr.rel (%p213) target = $region20
        $region19: #{tpu_custom_call.1} parent=11 // pred_region
          _
        $region20: #{tpu_custom_call.1} parent=11 // pred_fallthru
          _
        // Predicated region
        $region21: #{tpu_custom_call.1} parent=11 // pred_check
          %p216 = pneg %p112
        $region22: #{tpu_custom_call.1} parent=11 // pred_check_branch
          %218 = sbr.rel (%p216) target = $region24
        $region23: #{tpu_custom_call.1} parent=11 // pred_region
          %s220 = ssub.s32 1024, 1024
          %221 = vsyncadd [#allocation8], %s220
          %s222 = sshll.u32 [#allocation9], 4
          %s223 = int_to_ptr.vmem [resolvable:$true] %s222
          %228 = dma.hbm_to_vmem [thread:$0]  %s3, 1024, %s223, [#allocation8], 128, 128, 8
        $region24: #{tpu_custom_call.1} parent=11 // pred_fallthru
          _
        // Predicated region
        $region25: #{tpu_custom_call.1} parent=11 // pred_check
          %p229 = pneg %p133
        $region26: #{tpu_custom_call.1} parent=11 // pred_check_branch
          %231 = sbr.rel (%p229) target = $region28
        $region27: #{tpu_custom_call.1} parent=11 // pred_region
          _
        $region28: #{tpu_custom_call.1} parent=11 // pred_fallthru
          _
      $region12: #{tpu_custom_call.1} parent=5 // pred_fallthru
        _
      %p232 = scmp.lt.s32.totalorder %s23, 2
      // Predicated region
      $region29: #{tpu_custom_call.1} parent=5 // pred_check
        %p233 = pneg %p232
      $region30: #{tpu_custom_call.1} parent=5 // pred_check_branch
        %235 = sbr.rel (%p233) target = $region32
      $region31: #{tpu_custom_call.1} parent=5 // pred_region
        // Predicated region
        $region33: #{tpu_custom_call.1} parent=31 // pred_check
          %p236 = pneg %p43
        $region34: #{tpu_custom_call.1} parent=31 // pred_check_branch
          %238 = sbr.rel (%p236) target = $region36
        $region35: #{tpu_custom_call.1} parent=31 // pred_region
          %s239 = sand.u32 %s33, 1
          %s240 = scalar_lea.sflag [#allocation5], %s239
          %s241 = sand.u32 %s33, 1
          %s242 = smul.addr %s241, 16
          %s243 = scalar_lea.vmem [#allocation4], %s242
          %s245 = ssub.s32 256, 256
          %246 = vsyncadd %s240, %s245
          %s247 = smul.addr %s23, 2
          %s248 = smul.addr %s247, 128
          %s249 = scalar_lea.hbm %s0, %s248
          %s250 = sshll.u32 %s243, 4
          %s251 = int_to_ptr.vmem [resolvable:$true] %s250
          %256 = dma.hbm_to_vmem [thread:$0]  %s249, 256, %s251, %s240, 128, 128, 8
        $region36: #{tpu_custom_call.1} parent=31 // pred_fallthru
          _
      $region32: #{tpu_custom_call.1} parent=5 // pred_fallthru
        _
      %p257 = scmp.le.s32.totalorder 1, %s23
      %p258 = scmp.lt.s32.totalorder %s23, 3
      %p259 = pnand %p257, %p258
      %p260 = pneg %p259
      // Predicated region
      $region37: #{tpu_custom_call.1} parent=5 // pred_check
        _
      $region38: #{tpu_custom_call.1} parent=5 // pred_check_branch
        %262 = sbr.rel (%p259) target = $region40
      $region39: #{tpu_custom_call.1} parent=5 // pred_region
        %s263 = ssub.s32 %s23, 1
        %s264 = sand.u32 %s36, 1
        %s265 = scalar_lea.sflag [#allocation5], %s264
        %s266 = sand.u32 %s36, 1
        %s267 = smul.addr %s266, 16
        %s268 = scalar_lea.vmem [#allocation4], %s267
        // Predicated region
        $region41: #{tpu_custom_call.1} parent=39 // pred_check
          %p269 = pneg %p49
        $region42: #{tpu_custom_call.1} parent=39 // pred_check_branch
          %271 = sbr.rel (%p269) target = $region44
        $region43: #{tpu_custom_call.1} parent=39 // pred_region
          %272 = dma.done %s265, 256
        $region44: #{tpu_custom_call.1} parent=39 // pred_fallthru
          _
        // Predicated region
        $region45: #{tpu_custom_call.1} parent=39 // pred_check
          %p273 = pneg %p70
        $region46: #{tpu_custom_call.1} parent=39 // pred_check_branch
          %275 = sbr.rel (%p273) target = $region48
        $region47: #{tpu_custom_call.1} parent=39 // pred_region
          %276 = dma.done [#allocation8], 2048
        $region48: #{tpu_custom_call.1} parent=39 // pred_fallthru
          _
        // Predicated region
        $region49: #{tpu_custom_call.1} parent=39 // pred_check
          %p277 = pneg %p112
        $region50: #{tpu_custom_call.1} parent=39 // pred_check_branch
          %279 = sbr.rel (%p277) target = $region52
        $region51: #{tpu_custom_call.1} parent=39 // pred_region
          %280 = dma.done [#allocation8], 1024
        $region52: #{tpu_custom_call.1} parent=39 // pred_fallthru
          _
        %s281 = sand.u32 %s36, 1
        %s282 = scalar_lea.sflag [#allocation5], %s281
        %s283 = sand.u32 %s36, 1
        %s284 = smul.addr %s283, 16
        %s285 = scalar_lea.vmem [#allocation4], %s284
        %p286 = pneg %p49
        %p287 = pneg %p46
        %p288 = pneg %p70
        %p289 = pneg %p67
        %p290 = pneg %p91
        %p291 = pneg %p88
        %p292 = pneg %p112
        %p293 = pneg %p109
        %p294 = pneg %p133
        %p295 = pneg %p130
        %p296 = pneg %p159
        %p297 = pneg %p156
        %s298 = sand.u32 %s146, 1
        %s299 = scalar_lea.sflag [#allocation6], %s298
        %s300 = sand.u32 %s146, 1
        %s301 = smul.addr %s300, 64
        %s302 = scalar_lea.vmem [#allocation10], %s301
        %p303 = pneg %p185
        %p304 = pneg %p182
        %s305 = sand.u32 %s172, 1
        %s306 = scalar_lea.sflag [#allocation12], %s305
        %s307 = sand.u32 %s172, 1
        %s308 = smul.addr %s307, 16
        %s309 = scalar_lea.vmem [#allocation11], %s308
        %v310 = vld [vmem:[%s268] sm:$0xff]
        %v311 = vld [vmem:[%s268 + $0x8] sm:$0xff]
        %v312 = vld [vmem:[#allocation7] sm:$0xff]
        %v313 = vld [vmem:[#allocation7 + $0x8] sm:$0xff]
        %v314 = vld [vmem:[#allocation7 + $0x10] sm:$0xff]
        %v315 = vld [vmem:[#allocation7 + $0x18] sm:$0xff]
        %v316 = vld [vmem:[#allocation7 + $0x20] sm:$0xff]
        %v317 = vld [vmem:[#allocation7 + $0x28] sm:$0xff]
        %v318 = vld [vmem:[#allocation7 + $0x30] sm:$0xff]
        %v319 = vld [vmem:[#allocation7 + $0x38] sm:$0xff]
        %v320 = vld [vmem:[#allocation7 + $0x40] sm:$0xff]
        %v321 = vld [vmem:[#allocation7 + $0x48] sm:$0xff]
        %v322 = vld [vmem:[#allocation7 + $0x50] sm:$0xff]
        %v323 = vld [vmem:[#allocation7 + $0x58] sm:$0xff]
        %v324 = vld [vmem:[#allocation7 + $0x60] sm:$0xff]
        %v325 = vld [vmem:[#allocation7 + $0x68] sm:$0xff]
        %v326 = vld [vmem:[#allocation7 + $0x70] sm:$0xff]
        %v327 = vld [vmem:[#allocation7 + $0x78] sm:$0xff]
        %v328 = vld [vmem:[%s2] sm:$0x3]
        %v330 = vlaneseq
        %v331 = vshrl.u32 %v330, 7
        %v332 = vsub.s32 0, %v331
        %v333 = vrot.slane %v328, %v332
        %v334 = vlaneseq
        %v335 = vshrl.u32 %v334, 7
        %v336 = vsub.s32 1, %v335
        %v337 = vrot.slane %v328, %v336
        %vm340 = vcmask 523264
        %v342 = vsel %vm340, %v310, 0
        %v345 = vsel %vm340, %v311, 0
        %347 = vmatprep.subr.mxu0 0.0
        %348 = vmatpush1.msra.mxu0 0.0
        %349 = vmatprep.subr.mxu0 0.0
        %350 = vmatpush1.msra.mxu0 0.0
        %351 = vmatprep.subr.mxu0 0.0
        %352 = vmatpush1.msra.mxu0 0.0
        %353 = vmatprep.subr.mxu0 0.0
        %354 = vmatpush1.msra.mxu0 0.0
        %355 = vmatprep.subr.mxu0 0.0
        %356 = vmatpush1.msra.mxu0 0.0
        %357 = vmatprep.subr.mxu0 0.0
        %358 = vmatpush1.msra.mxu0 0.0
        %359 = vmatprep.subr.mxu0 0.0
        %360 = vmatpush1.msra.mxu0 0.0
        %361 = vmatprep.subr.mxu0 0.0
        %362 = vmatpush1.msra.mxu0 0.0
        %363 = vmatprep.subr.mxu0 %v327
        %364 = vmatpush1.msra.mxu0 %v326
        %365 = vmatprep.subr.mxu0 %v325
        %366 = vmatpush1.msra.mxu0 %v324
        %367 = vmatprep.subr.mxu0 %v323
        %368 = vmatpush1.msra.mxu0 %v322
        %369 = vmatprep.subr.mxu0 %v321
        %370 = vmatpush1.msra.mxu0 %v320
        %371 = vmatprep.subr.mxu0 %v319
        %372 = vmatpush1.msra.mxu0 %v318
        %373 = vmatprep.subr.mxu0 %v317
        %374 = vmatpush1.msra.mxu0 %v316
        %375 = vmatprep.subr.mxu0 %v315
        %376 = vmatpush1.msra.mxu0 %v314
        %377 = vmatprep.subr.mxu0 %v313
        %378 = vmatpush1.msra.mxu0 %v312
        %379 = vmatprep.subr.mxu0 0.0
        %380 = vmatpush2.msra.mxu0 0.0
        %381 = vmatprep.subr.mxu0 0.0
        %382 = vmatpush2.msra.mxu0 0.0
        %383 = vmatprep.subr.mxu0 0.0
        %384 = vmatpush2.msra.mxu0 0.0
        %385 = vmatprep.subr.mxu0 0.0
        %386 = vmatpush2.msra.mxu0 0.0
        %387 = vmatprep.subr.mxu0 0.0
        %388 = vmatpush2.msra.mxu0 0.0
        %389 = vmatprep.subr.mxu0 0.0
        %390 = vmatpush2.msra.mxu0 0.0
        %391 = vmatprep.subr.mxu0 0.0
        %392 = vmatpush2.msra.mxu0 0.0
        %393 = vmatprep.subr.mxu0 0.0
        %394 = vmatpush2.msra.mxu0 0.0
        %395 = vmatprep.subr.mxu0 0.0
        %396 = vmatpush2.msra.mxu0 0.0
        %397 = vmatprep.subr.mxu0 0.0
        %398 = vmatpush2.msra.mxu0 0.0
        %399 = vmatprep.subr.mxu0 0.0
        %400 = vmatpush2.msra.mxu0 0.0
        %401 = vmatprep.subr.mxu0 0.0
        %402 = vmatpush2.msra.mxu0 0.0
        %403 = vmatprep.subr.mxu0 0.0
        %404 = vmatpush2.msra.mxu0 0.0
        %405 = vmatprep.subr.mxu0 0.0
        %406 = vmatpush2.msra.mxu0 0.0
        %407 = vmatprep.subr.mxu0 0.0
        %408 = vmatpush2.msra.mxu0 0.0
        %409 = vmatprep.subr.mxu0 0.0
        %410 = vmatpush2.msra.mxu0 0.0
        %411 = vmatprep.mubr.f32.mxu0 0.0
        %412 = vmatmul.mubr.f32.gmra.mxu0 %v342
        %v413 = vpop.f32.mrf.mxu0
        %v414 = vadd.f32 %v333, %v413
        %v415 = vpop.f32.mrf.mxu0
        %v416 = vadd.f32 %v337, %v415
        %417 = vmatprep.mubr.f32.mxu0 0.0
        %418 = vmatmul.mubr.f32.gmra.mxu0 %v345
        %v419 = vpop.f32.mrf.mxu0
        %v420 = vadd.f32 %v333, %v419
        %v421 = vpop.f32.mrf.mxu0
        %v422 = vadd.f32 %v337, %v421
        %423 = vdwg.mxu0
        %424 = vst [vmem:[#allocation2] sm:$0xff] %v414
        %425 = vst.msk [vmem:[#allocation2 + $0x8] sm:$0xff] %vm340, %v416
        %426 = vst [vmem:[#allocation2 + $0x10] sm:$0xff] %v420
        %427 = vst.msk [vmem:[#allocation2 + $0x18] sm:$0xff] %vm340, %v422
        %v428 = vld [vmem:[#allocation2] sm:$0xff]
        %v429 = vld [vmem:[#allocation2 + $0x10] sm:$0xff]
        %v430 = vld [vmem:[#allocation2 + $0x8] sm:$0xff]
        %v431 = vld [vmem:[#allocation2 + $0x18] sm:$0xff]
        %434 = vrot.lane.b32.xlu0 %v428, 64
        %v435 = vpop.permute.xlu0 %434
        %436 = vrot.lane.b32.xlu0 %v429, 64
        %v437 = vpop.permute.xlu0 %436
        %vm438 = vcmask 130048
        %v439 = vsel %vm438, %v428, 0
        %v441 = vsel %vm438, %v429, 0
        %v443 = vsel %vm438, %v435, 0
        %v445 = vsel %vm438, %v437, 0
        %447 = vmatprep.subr.mxu0 0.0
        %448 = vmatpush1.xpose.msra.mxu0 0.0
        %449 = vmatprep.subr.mxu0 0.0
        %450 = vmatpush1.xpose.msra.mxu0 0.0
        %451 = vmatprep.subr.mxu0 0.0
        %452 = vmatpush1.xpose.msra.mxu0 0.0
        %453 = vmatprep.subr.mxu0 0.0
        %454 = vmatpush1.xpose.msra.mxu0 0.0
        %455 = vmatprep.subr.mxu0 0.0
        %456 = vmatpush1.xpose.msra.mxu0 0.0
        %457 = vmatprep.subr.mxu0 0.0
        %458 = vmatpush1.xpose.msra.mxu0 0.0
        %459 = vmatprep.subr.mxu0 0.0
        %460 = vmatpush1.xpose.msra.mxu0 0.0
        %461 = vmatprep.subr.mxu0 0.0
        %462 = vmatpush1.xpose.msra.mxu0 0.0
        %463 = vmatprep.subr.mxu0 0.0
        %464 = vmatpush1.xpose.msra.mxu0 0.0
        %465 = vmatprep.subr.mxu0 0.0
        %466 = vmatpush1.xpose.msra.mxu0 0.0
        %467 = vmatprep.subr.mxu0 0.0
        %468 = vmatpush1.xpose.msra.mxu0 0.0
        %469 = vmatprep.subr.mxu0 0.0
        %470 = vmatpush1.xpose.msra.mxu0 0.0
        %471 = vmatprep.subr.mxu0 0.0
        %472 = vmatpush1.xpose.msra.mxu0 0.0
        %473 = vmatprep.subr.mxu0 0.0
        %474 = vmatpush1.xpose.msra.mxu0 0.0
        %475 = vmatprep.subr.mxu0 0.0
        %476 = vmatpush1.xpose.msra.mxu0 %v445
        %477 = vmatprep.subr.mxu0 0.0
        %478 = vmatpush1.xpose.msra.mxu0 %v443
        %479 = vmatprep.subr.mxu0 0.0
        %480 = vmatpush2.xpose.msra.mxu0 0.0
        %481 = vmatprep.subr.mxu0 0.0
        %482 = vmatpush2.xpose.msra.mxu0 0.0
        %483 = vmatprep.subr.mxu0 0.0
        %484 = vmatpush2.xpose.msra.mxu0 0.0
        %485 = vmatprep.subr.mxu0 0.0
        %486 = vmatpush2.xpose.msra.mxu0 0.0
        %487 = vmatprep.subr.mxu0 0.0
        %488 = vmatpush2.xpose.msra.mxu0 0.0
        %489 = vmatprep.subr.mxu0 0.0
        %490 = vmatpush2.xpose.msra.mxu0 0.0
        %491 = vmatprep.subr.mxu0 0.0
        %492 = vmatpush2.xpose.msra.mxu0 0.0
        %493 = vmatprep.subr.mxu0 0.0
        %494 = vmatpush2.xpose.msra.mxu0 0.0
        %495 = vmatprep.subr.mxu0 0.0
        %496 = vmatpush2.xpose.msra.mxu0 0.0
        %497 = vmatprep.subr.mxu0 0.0
        %498 = vmatpush2.xpose.msra.mxu0 0.0
        %499 = vmatprep.subr.mxu0 0.0
        %500 = vmatpush2.xpose.msra.mxu0 0.0
        %501 = vmatprep.subr.mxu0 0.0
        %502 = vmatpush2.xpose.msra.mxu0 0.0
        %503 = vmatprep.subr.mxu0 0.0
        %504 = vmatpush2.xpose.msra.mxu0 0.0
        %505 = vmatprep.subr.mxu0 0.0
        %506 = vmatpush2.xpose.msra.mxu0 0.0
        %507 = vmatprep.subr.mxu0 0.0
        %508 = vmatpush2.xpose.msra.mxu0 0.0
        %509 = vmatprep.subr.mxu0 0.0
        %510 = vmatpush2.xpose.msra.mxu0 0.0
        %511 = vmatprep.mubr.f32.mxu0 0.0
        %512 = vmatmul.mubr.f32.gmra.mxu0 %v439
        %v513 = vpop.f32.mrf.mxu0
        %v514 = vadd.f32 0.0, %v513
        %v515 = vpop.f32.mrf.mxu0
        %516 = vmatprep.mubr.f32.mxu0 0.0
        %517 = vmatmul.mubr.f32.gmra.mxu0 %v441
        %v518 = vpop.f32.mrf.mxu0
        %v519 = vadd.f32 0.0, %v518
        %v520 = vpop.f32.mrf.mxu0
        %521 = vdwg.mxu0
        %v522 = vsel %vm438, %v514, -inf
        %523 = vmax.xlane.f32.xlu0 %v522
        %v524 = vpop.xlane.xlu0 %523
        %v525 = vsel %vm438, %v519, -inf
        %526 = vmax.xlane.f32.xlu0 %v525
        %v527 = vpop.xlane.xlu0 %526
        %v528 = vsub.f32 %v514, %v524
        %v529 = vsub.f32 %v519, %v527
        %v530 = vmul.f32 %v528, 1.442695
        %v531 = vpow.pop %v530
        %v532 = vmul.f32 %v529, 1.442695
        %v533 = vpow.pop %v532
        %v534 = vsel %vm438, %v531, 0.0
        %535 = vadd.xlane.f32.xlu0 %v534
        %v536 = vpop.xlane.xlu0 %535
        %v537 = vsel %vm438, %v533, 0.0
        %538 = vadd.xlane.f32.xlu0 %v537
        %v539 = vpop.xlane.xlu0 %538
        %v540 = vrcp.pop %v536
        %v541 = vrcp.pop %v539
        %v542 = vmul.f32 %v531, %v540
        %v543 = vmul.f32 %v533, %v541
        %544 = vst.msk [vmem:[%s302] sm:$0xff] %vm438, %v542
        %545 = vst.msk [vmem:[%s302 + $0x8] sm:$0xff] %vm438, %v543
        %v547 = vsel %vm438, %v542, 0
        %v550 = vsel %vm438, %v543, 0
        %552 = vmatprep.subr.mxu0 0.0
        %553 = vmatpush1.msra.mxu0 0.0
        %554 = vmatprep.subr.mxu0 0.0
        %555 = vmatpush1.msra.mxu0 0.0
        %556 = vmatprep.subr.mxu0 0.0
        %557 = vmatpush1.msra.mxu0 0.0
        %558 = vmatprep.subr.mxu0 0.0
        %559 = vmatpush1.msra.mxu0 0.0
        %560 = vmatprep.subr.mxu0 0.0
        %561 = vmatpush1.msra.mxu0 0.0
        %562 = vmatprep.subr.mxu0 0.0
        %563 = vmatpush1.msra.mxu0 0.0
        %564 = vmatprep.subr.mxu0 0.0
        %565 = vmatpush1.msra.mxu0 0.0
        %566 = vmatprep.subr.mxu0 0.0
        %567 = vmatpush1.msra.mxu0 0.0
        %568 = vmatprep.subr.mxu0 0.0
        %569 = vmatpush1.msra.mxu0 0.0
        %570 = vmatprep.subr.mxu0 0.0
        %571 = vmatpush1.msra.mxu0 0.0
        %572 = vmatprep.subr.mxu0 0.0
        %573 = vmatpush1.msra.mxu0 0.0
        %574 = vmatprep.subr.mxu0 0.0
        %575 = vmatpush1.msra.mxu0 0.0
        %576 = vmatprep.subr.mxu0 0.0
        %577 = vmatpush1.msra.mxu0 0.0
        %578 = vmatprep.subr.mxu0 0.0
        %579 = vmatpush1.msra.mxu0 0.0
        %580 = vmatprep.subr.mxu0 0.0
        %581 = vmatpush1.msra.mxu0 %v431
        %582 = vmatprep.subr.mxu0 0.0
        %583 = vmatpush1.msra.mxu0 %v430
        %584 = vmatprep.subr.mxu0 0.0
        %585 = vmatpush2.msra.mxu0 0.0
        %586 = vmatprep.subr.mxu0 0.0
        %587 = vmatpush2.msra.mxu0 0.0
        %588 = vmatprep.subr.mxu0 0.0
        %589 = vmatpush2.msra.mxu0 0.0
        %590 = vmatprep.subr.mxu0 0.0
        %591 = vmatpush2.msra.mxu0 0.0
        %592 = vmatprep.subr.mxu0 0.0
        %593 = vmatpush2.msra.mxu0 0.0
        %594 = vmatprep.subr.mxu0 0.0
        %595 = vmatpush2.msra.mxu0 0.0
        %596 = vmatprep.subr.mxu0 0.0
        %597 = vmatpush2.msra.mxu0 0.0
        %598 = vmatprep.subr.mxu0 0.0
        %599 = vmatpush2.msra.mxu0 0.0
        %600 = vmatprep.subr.mxu0 0.0
        %601 = vmatpush2.msra.mxu0 0.0
        %602 = vmatprep.subr.mxu0 0.0
        %603 = vmatpush2.msra.mxu0 0.0
        %604 = vmatprep.subr.mxu0 0.0
        %605 = vmatpush2.msra.mxu0 0.0
        %606 = vmatprep.subr.mxu0 0.0
        %607 = vmatpush2.msra.mxu0 0.0
        %608 = vmatprep.subr.mxu0 0.0
        %609 = vmatpush2.msra.mxu0 0.0
        %610 = vmatprep.subr.mxu0 0.0
        %611 = vmatpush2.msra.mxu0 0.0
        %612 = vmatprep.subr.mxu0 0.0
        %613 = vmatpush2.msra.mxu0 0.0
        %614 = vmatprep.subr.mxu0 0.0
        %615 = vmatpush2.msra.mxu0 0.0
        %616 = vmatprep.mubr.f32.mxu0 0.0
        %617 = vmatmul.mubr.f32.gmra.mxu0 %v547
        %v618 = vpop.f32.mrf.mxu0
        %v619 = vadd.f32 0.0, %v618
        %v620 = vpop.f32.mrf.mxu0
        %621 = vmatprep.mubr.f32.mxu0 0.0
        %622 = vmatmul.mubr.f32.gmra.mxu0 %v550
        %v623 = vpop.f32.mrf.mxu0
        %v624 = vadd.f32 0.0, %v623
        %v625 = vpop.f32.mrf.mxu0
        %626 = vdwg.mxu0
        %627 = vst.msk [vmem:[#allocation3] sm:$0xff] %vm438, %v619
        %628 = vst.msk [vmem:[#allocation3 + $0x8] sm:$0xff] %vm438, %v624
        %v629 = vld [vmem:[#allocation2] sm:$0xff]
        %v630 = vld [vmem:[#allocation2 + $0x10] sm:$0xff]
        %v631 = vld [vmem:[#allocation2 + $0x8] sm:$0xff]
        %v632 = vld [vmem:[#allocation2 + $0x18] sm:$0xff]
        %635 = vrot.lane.b32.xlu0 %v629, 112
        %v636 = vpop.permute.xlu0 %635
        %637 = vrot.lane.b32.xlu0 %v630, 112
        %v638 = vpop.permute.xlu0 %637
        %639 = vrot.lane.b32.xlu0 %v629, 48
        %v640 = vpop.permute.xlu0 %639
        %641 = vrot.lane.b32.xlu0 %v630, 48
        %v642 = vpop.permute.xlu0 %641
        %v643 = vsel %vm438, %v636, 0
        %v645 = vsel %vm438, %v638, 0
        %v647 = vsel %vm438, %v640, 0
        %v649 = vsel %vm438, %v642, 0
        %651 = vmatprep.subr.mxu0 0.0
        %652 = vmatpush1.xpose.msra.mxu0 0.0
        %653 = vmatprep.subr.mxu0 0.0
        %654 = vmatpush1.xpose.msra.mxu0 0.0
        %655 = vmatprep.subr.mxu0 0.0
        %656 = vmatpush1.xpose.msra.mxu0 0.0
        %657 = vmatprep.subr.mxu0 0.0
        %658 = vmatpush1.xpose.msra.mxu0 0.0
        %659 = vmatprep.subr.mxu0 0.0
        %660 = vmatpush1.xpose.msra.mxu0 0.0
        %661 = vmatprep.subr.mxu0 0.0
        %662 = vmatpush1.xpose.msra.mxu0 0.0
        %663 = vmatprep.subr.mxu0 0.0
        %664 = vmatpush1.xpose.msra.mxu0 0.0
        %665 = vmatprep.subr.mxu0 0.0
        %666 = vmatpush1.xpose.msra.mxu0 0.0
        %667 = vmatprep.subr.mxu0 0.0
        %668 = vmatpush1.xpose.msra.mxu0 0.0
        %669 = vmatprep.subr.mxu0 0.0
        %670 = vmatpush1.xpose.msra.mxu0 0.0
        %671 = vmatprep.subr.mxu0 0.0
        %672 = vmatpush1.xpose.msra.mxu0 0.0
        %673 = vmatprep.subr.mxu0 0.0
        %674 = vmatpush1.xpose.msra.mxu0 0.0
        %675 = vmatprep.subr.mxu0 0.0
        %676 = vmatpush1.xpose.msra.mxu0 0.0
        %677 = vmatprep.subr.mxu0 0.0
        %678 = vmatpush1.xpose.msra.mxu0 0.0
        %679 = vmatprep.subr.mxu0 0.0
        %680 = vmatpush1.xpose.msra.mxu0 %v649
        %681 = vmatprep.subr.mxu0 0.0
        %682 = vmatpush1.xpose.msra.mxu0 %v647
        %683 = vmatprep.subr.mxu0 0.0
        %684 = vmatpush2.xpose.msra.mxu0 0.0
        %685 = vmatprep.subr.mxu0 0.0
        %686 = vmatpush2.xpose.msra.mxu0 0.0
        %687 = vmatprep.subr.mxu0 0.0
        %688 = vmatpush2.xpose.msra.mxu0 0.0
        %689 = vmatprep.subr.mxu0 0.0
        %690 = vmatpush2.xpose.msra.mxu0 0.0
        %691 = vmatprep.subr.mxu0 0.0
        %692 = vmatpush2.xpose.msra.mxu0 0.0
        %693 = vmatprep.subr.mxu0 0.0
        %694 = vmatpush2.xpose.msra.mxu0 0.0
        %695 = vmatprep.subr.mxu0 0.0
        %696 = vmatpush2.xpose.msra.mxu0 0.0
        %697 = vmatprep.subr.mxu0 0.0
        %698 = vmatpush2.xpose.msra.mxu0 0.0
        %699 = vmatprep.subr.mxu0 0.0
        %700 = vmatpush2.xpose.msra.mxu0 0.0
        %701 = vmatprep.subr.mxu0 0.0
        %702 = vmatpush2.xpose.msra.mxu0 0.0
        %703 = vmatprep.subr.mxu0 0.0
        %704 = vmatpush2.xpose.msra.mxu0 0.0
        %705 = vmatprep.subr.mxu0 0.0
        %706 = vmatpush2.xpose.msra.mxu0 0.0
        %707 = vmatprep.subr.mxu0 0.0
        %708 = vmatpush2.xpose.msra.mxu0 0.0
        %709 = vmatprep.subr.mxu0 0.0
        %710 = vmatpush2.xpose.msra.mxu0 0.0
        %711 = vmatprep.subr.mxu0 0.0
        %712 = vmatpush2.xpose.msra.mxu0 0.0
        %713 = vmatprep.subr.mxu0 0.0
        %714 = vmatpush2.xpose.msra.mxu0 0.0
        %715 = vmatprep.mubr.f32.mxu0 0.0
        %716 = vmatmul.mubr.f32.gmra.mxu0 %v643
        %v717 = vpop.f32.mrf.mxu0
        %v718 = vadd.f32 0.0, %v717
        %v719 = vpop.f32.mrf.mxu0
        %720 = vmatprep.mubr.f32.mxu0 0.0
        %721 = vmatmul.mubr.f32.gmra.mxu0 %v645
        %v722 = vpop.f32.mrf.mxu0
        %v723 = vadd.f32 0.0, %v722
        %v724 = vpop.f32.mrf.mxu0
        %725 = vdwg.mxu0
        %v726 = vsel %vm438, %v718, -inf
        %727 = vmax.xlane.f32.xlu0 %v726
        %v728 = vpop.xlane.xlu0 %727
        %v729 = vsel %vm438, %v723, -inf
        %730 = vmax.xlane.f32.xlu0 %v729
        %v731 = vpop.xlane.xlu0 %730
        %v732 = vsub.f32 %v718, %v728
        %v733 = vsub.f32 %v723, %v731
        %v734 = vmul.f32 %v732, 1.442695
        %v735 = vpow.pop %v734
        %v736 = vmul.f32 %v733, 1.442695
        %v737 = vpow.pop %v736
        %v738 = vsel %vm438, %v735, 0.0
        %739 = vadd.xlane.f32.xlu0 %v738
        %v740 = vpop.xlane.xlu0 %739
        %v741 = vsel %vm438, %v737, 0.0
        %742 = vadd.xlane.f32.xlu0 %v741
        %v743 = vpop.xlane.xlu0 %742
        %v744 = vrcp.pop %v740
        %v745 = vrcp.pop %v743
        %v746 = vmul.f32 %v735, %v744
        %v747 = vmul.f32 %v737, %v745
        %s748 = scalar_lea.vmem %s302, 16 [#allocation10]
        %749 = vst.msk [vmem:[%s748] sm:$0xff] %vm438, %v746
        %750 = vst.msk [vmem:[%s748 + $0x8] sm:$0xff] %vm438, %v747
        %753 = vrot.lane.b32.xlu0 %v631, 112
        %v754 = vpop.permute.xlu0 %753
        %755 = vrot.lane.b32.xlu0 %v632, 112
        %v756 = vpop.permute.xlu0 %755
        %v760 = vsel %vm438, %v746, 0
        %v763 = vsel %vm438, %v747, 0
        %765 = vmatprep.subr.mxu0 0.0
        %766 = vmatpush1.msra.mxu0 0.0
        %767 = vmatprep.subr.mxu0 0.0
        %768 = vmatpush1.msra.mxu0 0.0
        %769 = vmatprep.subr.mxu0 0.0
        %770 = vmatpush1.msra.mxu0 0.0
        %771 = vmatprep.subr.mxu0 0.0
        %772 = vmatpush1.msra.mxu0 0.0
        %773 = vmatprep.subr.mxu0 0.0
        %774 = vmatpush1.msra.mxu0 0.0
        %775 = vmatprep.subr.mxu0 0.0
        %776 = vmatpush1.msra.mxu0 0.0
        %777 = vmatprep.subr.mxu0 0.0
        %778 = vmatpush1.msra.mxu0 0.0
        %779 = vmatprep.subr.mxu0 0.0
        %780 = vmatpush1.msra.mxu0 0.0
        %781 = vmatprep.subr.mxu0 0.0
        %782 = vmatpush1.msra.mxu0 0.0
        %783 = vmatprep.subr.mxu0 0.0
        %784 = vmatpush1.msra.mxu0 0.0
        %785 = vmatprep.subr.mxu0 0.0
        %786 = vmatpush1.msra.mxu0 0.0
        %787 = vmatprep.subr.mxu0 0.0
        %788 = vmatpush1.msra.mxu0 0.0
        %789 = vmatprep.subr.mxu0 0.0
        %790 = vmatpush1.msra.mxu0 0.0
        %791 = vmatprep.subr.mxu0 0.0
        %792 = vmatpush1.msra.mxu0 0.0
        %793 = vmatprep.subr.mxu0 0.0
        %794 = vmatpush1.msra.mxu0 %v756
        %795 = vmatprep.subr.mxu0 0.0
        %796 = vmatpush1.msra.mxu0 %v754
        %797 = vmatprep.subr.mxu0 0.0
        %798 = vmatpush2.msra.mxu0 0.0
        %799 = vmatprep.subr.mxu0 0.0
        %800 = vmatpush2.msra.mxu0 0.0
        %801 = vmatprep.subr.mxu0 0.0
        %802 = vmatpush2.msra.mxu0 0.0
        %803 = vmatprep.subr.mxu0 0.0
        %804 = vmatpush2.msra.mxu0 0.0
        %805 = vmatprep.subr.mxu0 0.0
        %806 = vmatpush2.msra.mxu0 0.0
        %807 = vmatprep.subr.mxu0 0.0
        %808 = vmatpush2.msra.mxu0 0.0
        %809 = vmatprep.subr.mxu0 0.0
        %810 = vmatpush2.msra.mxu0 0.0
        %811 = vmatprep.subr.mxu0 0.0
        %812 = vmatpush2.msra.mxu0 0.0
        %813 = vmatprep.subr.mxu0 0.0
        %814 = vmatpush2.msra.mxu0 0.0
        %815 = vmatprep.subr.mxu0 0.0
        %816 = vmatpush2.msra.mxu0 0.0
        %817 = vmatprep.subr.mxu0 0.0
        %818 = vmatpush2.msra.mxu0 0.0
        %819 = vmatprep.subr.mxu0 0.0
        %820 = vmatpush2.msra.mxu0 0.0
        %821 = vmatprep.subr.mxu0 0.0
        %822 = vmatpush2.msra.mxu0 0.0
        %823 = vmatprep.subr.mxu0 0.0
        %824 = vmatpush2.msra.mxu0 0.0
        %825 = vmatprep.subr.mxu0 0.0
        %826 = vmatpush2.msra.mxu0 0.0
        %827 = vmatprep.subr.mxu0 0.0
        %828 = vmatpush2.msra.mxu0 0.0
        %829 = vmatprep.mubr.f32.mxu0 0.0
        %830 = vmatmul.mubr.f32.gmra.mxu0 %v760
        %v831 = vpop.f32.mrf.mxu0
        %v832 = vadd.f32 0.0, %v831
        %v833 = vpop.f32.mrf.mxu0
        %834 = vmatprep.mubr.f32.mxu0 0.0
        %835 = vmatmul.mubr.f32.gmra.mxu0 %v763
        %v836 = vpop.f32.mrf.mxu0
        %v837 = vadd.f32 0.0, %v836
        %v838 = vpop.f32.mrf.mxu0
        %839 = vdwg.mxu0
        %842 = vrot.lane.b32.xlu0 %v832, 16
        %v843 = vpop.permute.xlu0 %842
        %844 = vrot.lane.b32.xlu0 %v837, 16
        %v845 = vpop.permute.xlu0 %844
        %vm848 = vcmask 261248
        %849 = vst.msk [vmem:[#allocation3] sm:$0xff] %vm848, %v843
        %850 = vst.msk [vmem:[#allocation3 + $0x8] sm:$0xff] %vm848, %v845
        %v851 = vld [vmem:[#allocation2] sm:$0xff]
        %v852 = vld [vmem:[#allocation2 + $0x10] sm:$0xff]
        %v853 = vld [vmem:[#allocation2 + $0x8] sm:$0xff]
        %v854 = vld [vmem:[#allocation2 + $0x18] sm:$0xff]
        %857 = vrot.lane.b32.xlu0 %v851, 96
        %v858 = vpop.permute.xlu0 %857
        %859 = vrot.lane.b32.xlu0 %v852, 96
        %v860 = vpop.permute.xlu0 %859
        %861 = vrot.lane.b32.xlu0 %v851, 32
        %v862 = vpop.permute.xlu0 %861
        %863 = vrot.lane.b32.xlu0 %v852, 32
        %v864 = vpop.permute.xlu0 %863
        %v865 = vsel %vm438, %v858, 0
        %v867 = vsel %vm438, %v860, 0
        %v869 = vsel %vm438, %v862, 0
        %v871 = vsel %vm438, %v864, 0
        %873 = vmatprep.subr.mxu0 0.0
        %874 = vmatpush1.xpose.msra.mxu0 0.0
        %875 = vmatprep.subr.mxu0 0.0
        %876 = vmatpush1.xpose.msra.mxu0 0.0
        %877 = vmatprep.subr.mxu0 0.0
        %878 = vmatpush1.xpose.msra.mxu0 0.0
        %879 = vmatprep.subr.mxu0 0.0
        %880 = vmatpush1.xpose.msra.mxu0 0.0
        %881 = vmatprep.subr.mxu0 0.0
        %882 = vmatpush1.xpose.msra.mxu0 0.0
        %883 = vmatprep.subr.mxu0 0.0
        %884 = vmatpush1.xpose.msra.mxu0 0.0
        %885 = vmatprep.subr.mxu0 0.0
        %886 = vmatpush1.xpose.msra.mxu0 0.0
        %887 = vmatprep.subr.mxu0 0.0
        %888 = vmatpush1.xpose.msra.mxu0 0.0
        %889 = vmatprep.subr.mxu0 0.0
        %890 = vmatpush1.xpose.msra.mxu0 0.0
        %891 = vmatprep.subr.mxu0 0.0
        %892 = vmatpush1.xpose.msra.mxu0 0.0
        %893 = vmatprep.subr.mxu0 0.0
        %894 = vmatpush1.xpose.msra.mxu0 0.0
        %895 = vmatprep.subr.mxu0 0.0
        %896 = vmatpush1.xpose.msra.mxu0 0.0
        %897 = vmatprep.subr.mxu0 0.0
        %898 = vmatpush1.xpose.msra.mxu0 0.0
        %899 = vmatprep.subr.mxu0 0.0
        %900 = vmatpush1.xpose.msra.mxu0 0.0
        %901 = vmatprep.subr.mxu0 0.0
        %902 = vmatpush1.xpose.msra.mxu0 %v871
        %903 = vmatprep.subr.mxu0 0.0
        %904 = vmatpush1.xpose.msra.mxu0 %v869
        %905 = vmatprep.subr.mxu0 0.0
        %906 = vmatpush2.xpose.msra.mxu0 0.0
        %907 = vmatprep.subr.mxu0 0.0
        %908 = vmatpush2.xpose.msra.mxu0 0.0
        %909 = vmatprep.subr.mxu0 0.0
        %910 = vmatpush2.xpose.msra.mxu0 0.0
        %911 = vmatprep.subr.mxu0 0.0
        %912 = vmatpush2.xpose.msra.mxu0 0.0
        %913 = vmatprep.subr.mxu0 0.0
        %914 = vmatpush2.xpose.msra.mxu0 0.0
        %915 = vmatprep.subr.mxu0 0.0
        %916 = vmatpush2.xpose.msra.mxu0 0.0
        %917 = vmatprep.subr.mxu0 0.0
        %918 = vmatpush2.xpose.msra.mxu0 0.0
        %919 = vmatprep.subr.mxu0 0.0
        %920 = vmatpush2.xpose.msra.mxu0 0.0
        %921 = vmatprep.subr.mxu0 0.0
        %922 = vmatpush2.xpose.msra.mxu0 0.0
        %923 = vmatprep.subr.mxu0 0.0
        %924 = vmatpush2.xpose.msra.mxu0 0.0
        %925 = vmatprep.subr.mxu0 0.0
        %926 = vmatpush2.xpose.msra.mxu0 0.0
        %927 = vmatprep.subr.mxu0 0.0
        %928 = vmatpush2.xpose.msra.mxu0 0.0
        %929 = vmatprep.subr.mxu0 0.0
        %930 = vmatpush2.xpose.msra.mxu0 0.0
        %931 = vmatprep.subr.mxu0 0.0
        %932 = vmatpush2.xpose.msra.mxu0 0.0
        %933 = vmatprep.subr.mxu0 0.0
        %934 = vmatpush2.xpose.msra.mxu0 0.0
        %935 = vmatprep.subr.mxu0 0.0
        %936 = vmatpush2.xpose.msra.mxu0 0.0
        %937 = vmatprep.mubr.f32.mxu0 0.0
        %938 = vmatmul.mubr.f32.gmra.mxu0 %v865
        %v939 = vpop.f32.mrf.mxu0
        %v940 = vadd.f32 0.0, %v939
        %v941 = vpop.f32.mrf.mxu0
        %942 = vmatprep.mubr.f32.mxu0 0.0
        %943 = vmatmul.mubr.f32.gmra.mxu0 %v867
        %v944 = vpop.f32.mrf.mxu0
        %v945 = vadd.f32 0.0, %v944
        %v946 = vpop.f32.mrf.mxu0
        %947 = vdwg.mxu0
        %v948 = vsel %vm438, %v940, -inf
        %949 = vmax.xlane.f32.xlu0 %v948
        %v950 = vpop.xlane.xlu0 %949
        %v951 = vsel %vm438, %v945, -inf
        %952 = vmax.xlane.f32.xlu0 %v951
        %v953 = vpop.xlane.xlu0 %952
        %v954 = vsub.f32 %v940, %v950
        %v955 = vsub.f32 %v945, %v953
        %v956 = vmul.f32 %v954, 1.442695
        %v957 = vpow.pop %v956
        %v958 = vmul.f32 %v955, 1.442695
        %v959 = vpow.pop %v958
        %v960 = vsel %vm438, %v957, 0.0
        %961 = vadd.xlane.f32.xlu0 %v960
        %v962 = vpop.xlane.xlu0 %961
        %v963 = vsel %vm438, %v959, 0.0
        %964 = vadd.xlane.f32.xlu0 %v963
        %v965 = vpop.xlane.xlu0 %964
        %v966 = vrcp.pop %v962
        %v967 = vrcp.pop %v965
        %v968 = vmul.f32 %v957, %v966
        %v969 = vmul.f32 %v959, %v967
        %s970 = scalar_lea.vmem %s302, 32 [#allocation10]
        %971 = vst.msk [vmem:[%s970] sm:$0xff] %vm438, %v968
        %972 = vst.msk [vmem:[%s970 + $0x8] sm:$0xff] %vm438, %v969
        %975 = vrot.lane.b32.xlu0 %v853, 96
        %v976 = vpop.permute.xlu0 %975
        %977 = vrot.lane.b32.xlu0 %v854, 96
        %v978 = vpop.permute.xlu0 %977
        %v982 = vsel %vm438, %v968, 0
        %v985 = vsel %vm438, %v969, 0
        %987 = vmatprep.subr.mxu0 0.0
        %988 = vmatpush1.msra.mxu0 0.0
        %989 = vmatprep.subr.mxu0 0.0
        %990 = vmatpush1.msra.mxu0 0.0
        %991 = vmatprep.subr.mxu0 0.0
        %992 = vmatpush1.msra.mxu0 0.0
        %993 = vmatprep.subr.mxu0 0.0
        %994 = vmatpush1.msra.mxu0 0.0
        %995 = vmatprep.subr.mxu0 0.0
        %996 = vmatpush1.msra.mxu0 0.0
        %997 = vmatprep.subr.mxu0 0.0
        %998 = vmatpush1.msra.mxu0 0.0
        %999 = vmatprep.subr.mxu0 0.0
        %1000 = vmatpush1.msra.mxu0 0.0
        %1001 = vmatprep.subr.mxu0 0.0
        %1002 = vmatpush1.msra.mxu0 0.0
        %1003 = vmatprep.subr.mxu0 0.0
        %1004 = vmatpush1.msra.mxu0 0.0
        %1005 = vmatprep.subr.mxu0 0.0
        %1006 = vmatpush1.msra.mxu0 0.0
        %1007 = vmatprep.subr.mxu0 0.0
        %1008 = vmatpush1.msra.mxu0 0.0
        %1009 = vmatprep.subr.mxu0 0.0
        %1010 = vmatpush1.msra.mxu0 0.0
        %1011 = vmatprep.subr.mxu0 0.0
        %1012 = vmatpush1.msra.mxu0 0.0
        %1013 = vmatprep.subr.mxu0 0.0
        %1014 = vmatpush1.msra.mxu0 0.0
        %1015 = vmatprep.subr.mxu0 0.0
        %1016 = vmatpush1.msra.mxu0 %v978
        %1017 = vmatprep.subr.mxu0 0.0
        %1018 = vmatpush1.msra.mxu0 %v976
        %1019 = vmatprep.subr.mxu0 0.0
        %1020 = vmatpush2.msra.mxu0 0.0
        %1021 = vmatprep.subr.mxu0 0.0
        %1022 = vmatpush2.msra.mxu0 0.0
        %1023 = vmatprep.subr.mxu0 0.0
        %1024 = vmatpush2.msra.mxu0 0.0
        %1025 = vmatprep.subr.mxu0 0.0
        %1026 = vmatpush2.msra.mxu0 0.0
        %1027 = vmatprep.subr.mxu0 0.0
        %1028 = vmatpush2.msra.mxu0 0.0
        %1029 = vmatprep.subr.mxu0 0.0
        %1030 = vmatpush2.msra.mxu0 0.0
        %1031 = vmatprep.subr.mxu0 0.0
        %1032 = vmatpush2.msra.mxu0 0.0
        %1033 = vmatprep.subr.mxu0 0.0
        %1034 = vmatpush2.msra.mxu0 0.0
        %1035 = vmatprep.subr.mxu0 0.0
        %1036 = vmatpush2.msra.mxu0 0.0
        %1037 = vmatprep.subr.mxu0 0.0
        %1038 = vmatpush2.msra.mxu0 0.0
        %1039 = vmatprep.subr.mxu0 0.0
        %1040 = vmatpush2.msra.mxu0 0.0
        %1041 = vmatprep.subr.mxu0 0.0
        %1042 = vmatpush2.msra.mxu0 0.0
        %1043 = vmatprep.subr.mxu0 0.0
        %1044 = vmatpush2.msra.mxu0 0.0
        %1045 = vmatprep.subr.mxu0 0.0
        %1046 = vmatpush2.msra.mxu0 0.0
        %1047 = vmatprep.subr.mxu0 0.0
        %1048 = vmatpush2.msra.mxu0 0.0
        %1049 = vmatprep.subr.mxu0 0.0
        %1050 = vmatpush2.msra.mxu0 0.0
        %1051 = vmatprep.mubr.f32.mxu0 0.0
        %1052 = vmatmul.mubr.f32.gmra.mxu0 %v982
        %v1053 = vpop.f32.mrf.mxu0
        %v1054 = vadd.f32 0.0, %v1053
        %v1055 = vpop.f32.mrf.mxu0
        %1056 = vmatprep.mubr.f32.mxu0 0.0
        %1057 = vmatmul.mubr.f32.gmra.mxu0 %v985
        %v1058 = vpop.f32.mrf.mxu0
        %v1059 = vadd.f32 0.0, %v1058
        %v1060 = vpop.f32.mrf.mxu0
        %1061 = vdwg.mxu0
        %1064 = vrot.lane.b32.xlu0 %v1054, 32
        %v1065 = vpop.permute.xlu0 %1064
        %1066 = vrot.lane.b32.xlu0 %v1059, 32
        %v1067 = vpop.permute.xlu0 %1066
        %vm1070 = vcmask 392448
        %1071 = vst.msk [vmem:[#allocation3] sm:$0xff] %vm1070, %v1065
        %1072 = vst.msk [vmem:[#allocation3 + $0x8] sm:$0xff] %vm1070, %v1067
        %v1073 = vld [vmem:[#allocation2] sm:$0xff]
        %v1074 = vld [vmem:[#allocation2 + $0x10] sm:$0xff]
        %v1075 = vld [vmem:[#allocation2 + $0x8] sm:$0xff]
        %v1076 = vld [vmem:[#allocation2 + $0x18] sm:$0xff]
        %1079 = vrot.lane.b32.xlu0 %v1073, 80
        %v1080 = vpop.permute.xlu0 %1079
        %1081 = vrot.lane.b32.xlu0 %v1074, 80
        %v1082 = vpop.permute.xlu0 %1081
        %1083 = vrot.lane.b32.xlu0 %v1073, 16
        %v1084 = vpop.permute.xlu0 %1083
        %1085 = vrot.lane.b32.xlu0 %v1074, 16
        %v1086 = vpop.permute.xlu0 %1085
        %v1087 = vsel %vm438, %v1080, 0
        %v1089 = vsel %vm438, %v1082, 0
        %v1091 = vsel %vm438, %v1084, 0
        %v1093 = vsel %vm438, %v1086, 0
        %1095 = vmatprep.subr.mxu0 0.0
        %1096 = vmatpush1.xpose.msra.mxu0 0.0
        %1097 = vmatprep.subr.mxu0 0.0
        %1098 = vmatpush1.xpose.msra.mxu0 0.0
        %1099 = vmatprep.subr.mxu0 0.0
        %1100 = vmatpush1.xpose.msra.mxu0 0.0
        %1101 = vmatprep.subr.mxu0 0.0
        %1102 = vmatpush1.xpose.msra.mxu0 0.0
        %1103 = vmatprep.subr.mxu0 0.0
        %1104 = vmatpush1.xpose.msra.mxu0 0.0
        %1105 = vmatprep.subr.mxu0 0.0
        %1106 = vmatpush1.xpose.msra.mxu0 0.0
        %1107 = vmatprep.subr.mxu0 0.0
        %1108 = vmatpush1.xpose.msra.mxu0 0.0
        %1109 = vmatprep.subr.mxu0 0.0
        %1110 = vmatpush1.xpose.msra.mxu0 0.0
        %1111 = vmatprep.subr.mxu0 0.0
        %1112 = vmatpush1.xpose.msra.mxu0 0.0
        %1113 = vmatprep.subr.mxu0 0.0
        %1114 = vmatpush1.xpose.msra.mxu0 0.0
        %1115 = vmatprep.subr.mxu0 0.0
        %1116 = vmatpush1.xpose.msra.mxu0 0.0
        %1117 = vmatprep.subr.mxu0 0.0
        %1118 = vmatpush1.xpose.msra.mxu0 0.0
        %1119 = vmatprep.subr.mxu0 0.0
        %1120 = vmatpush1.xpose.msra.mxu0 0.0
        %1121 = vmatprep.subr.mxu0 0.0
        %1122 = vmatpush1.xpose.msra.mxu0 0.0
        %1123 = vmatprep.subr.mxu0 0.0
        %1124 = vmatpush1.xpose.msra.mxu0 %v1093
        %1125 = vmatprep.subr.mxu0 0.0
        %1126 = vmatpush1.xpose.msra.mxu0 %v1091
        %1127 = vmatprep.subr.mxu0 0.0
        %1128 = vmatpush2.xpose.msra.mxu0 0.0
        %1129 = vmatprep.subr.mxu0 0.0
        %1130 = vmatpush2.xpose.msra.mxu0 0.0
        %1131 = vmatprep.subr.mxu0 0.0
        %1132 = vmatpush2.xpose.msra.mxu0 0.0
        %1133 = vmatprep.subr.mxu0 0.0
        %1134 = vmatpush2.xpose.msra.mxu0 0.0
        %1135 = vmatprep.subr.mxu0 0.0
        %1136 = vmatpush2.xpose.msra.mxu0 0.0
        %1137 = vmatprep.subr.mxu0 0.0
        %1138 = vmatpush2.xpose.msra.mxu0 0.0
        %1139 = vmatprep.subr.mxu0 0.0
        %1140 = vmatpush2.xpose.msra.mxu0 0.0
        %1141 = vmatprep.subr.mxu0 0.0
        %1142 = vmatpush2.xpose.msra.mxu0 0.0
        %1143 = vmatprep.subr.mxu0 0.0
        %1144 = vmatpush2.xpose.msra.mxu0 0.0
        %1145 = vmatprep.subr.mxu0 0.0
        %1146 = vmatpush2.xpose.msra.mxu0 0.0
        %1147 = vmatprep.subr.mxu0 0.0
        %1148 = vmatpush2.xpose.msra.mxu0 0.0
        %1149 = vmatprep.subr.mxu0 0.0
        %1150 = vmatpush2.xpose.msra.mxu0 0.0
        %1151 = vmatprep.subr.mxu0 0.0
        %1152 = vmatpush2.xpose.msra.mxu0 0.0
        %1153 = vmatprep.subr.mxu0 0.0
        %1154 = vmatpush2.xpose.msra.mxu0 0.0
        %1155 = vmatprep.subr.mxu0 0.0
        %1156 = vmatpush2.xpose.msra.mxu0 0.0
        %1157 = vmatprep.subr.mxu0 0.0
        %1158 = vmatpush2.xpose.msra.mxu0 0.0
        %1159 = vmatprep.mubr.f32.mxu0 0.0
        %1160 = vmatmul.mubr.f32.gmra.mxu0 %v1087
        %v1161 = vpop.f32.mrf.mxu0
        %v1162 = vadd.f32 0.0, %v1161
        %v1163 = vpop.f32.mrf.mxu0
        %1164 = vmatprep.mubr.f32.mxu0 0.0
        %1165 = vmatmul.mubr.f32.gmra.mxu0 %v1089
        %v1166 = vpop.f32.mrf.mxu0
        %v1167 = vadd.f32 0.0, %v1166
        %v1168 = vpop.f32.mrf.mxu0
        %1169 = vdwg.mxu0
        %v1170 = vsel %vm438, %v1162, -inf
        %1171 = vmax.xlane.f32.xlu0 %v1170
        %v1172 = vpop.xlane.xlu0 %1171
        %v1173 = vsel %vm438, %v1167, -inf
        %1174 = vmax.xlane.f32.xlu0 %v1173
        %v1175 = vpop.xlane.xlu0 %1174
        %v1176 = vsub.f32 %v1162, %v1172
        %v1177 = vsub.f32 %v1167, %v1175
        %v1178 = vmul.f32 %v1176, 1.442695
        %v1179 = vpow.pop %v1178
        %v1180 = vmul.f32 %v1177, 1.442695
        %v1181 = vpow.pop %v1180
        %v1182 = vsel %vm438, %v1179, 0.0
        %1183 = vadd.xlane.f32.xlu0 %v1182
        %v1184 = vpop.xlane.xlu0 %1183
        %v1185 = vsel %vm438, %v1181, 0.0
        %1186 = vadd.xlane.f32.xlu0 %v1185
        %v1187 = vpop.xlane.xlu0 %1186
        %v1188 = vrcp.pop %v1184
        %v1189 = vrcp.pop %v1187
        %v1190 = vmul.f32 %v1179, %v1188
        %v1191 = vmul.f32 %v1181, %v1189
        %s1192 = scalar_lea.vmem %s302, 48 [#allocation10]
        %1193 = vst.msk [vmem:[%s1192] sm:$0xff] %vm438, %v1190
        %1194 = vst.msk [vmem:[%s1192 + $0x8] sm:$0xff] %vm438, %v1191
        %1197 = vrot.lane.b32.xlu0 %v1075, 80
        %v1198 = vpop.permute.xlu0 %1197
        %1199 = vrot.lane.b32.xlu0 %v1076, 80
        %v1200 = vpop.permute.xlu0 %1199
        %v1204 = vsel %vm438, %v1190, 0
        %v1207 = vsel %vm438, %v1191, 0
        %1209 = vmatprep.subr.mxu0 0.0
        %1210 = vmatpush1.msra.mxu0 0.0
        %1211 = vmatprep.subr.mxu0 0.0
        %1212 = vmatpush1.msra.mxu0 0.0
        %1213 = vmatprep.subr.mxu0 0.0
        %1214 = vmatpush1.msra.mxu0 0.0
        %1215 = vmatprep.subr.mxu0 0.0
        %1216 = vmatpush1.msra.mxu0 0.0
        %1217 = vmatprep.subr.mxu0 0.0
        %1218 = vmatpush1.msra.mxu0 0.0
        %1219 = vmatprep.subr.mxu0 0.0
        %1220 = vmatpush1.msra.mxu0 0.0
        %1221 = vmatprep.subr.mxu0 0.0
        %1222 = vmatpush1.msra.mxu0 0.0
        %1223 = vmatprep.subr.mxu0 0.0
        %1224 = vmatpush1.msra.mxu0 0.0
        %1225 = vmatprep.subr.mxu0 0.0
        %1226 = vmatpush1.msra.mxu0 0.0
        %1227 = vmatprep.subr.mxu0 0.0
        %1228 = vmatpush1.msra.mxu0 0.0
        %1229 = vmatprep.subr.mxu0 0.0
        %1230 = vmatpush1.msra.mxu0 0.0
        %1231 = vmatprep.subr.mxu0 0.0
        %1232 = vmatpush1.msra.mxu0 0.0
        %1233 = vmatprep.subr.mxu0 0.0
        %1234 = vmatpush1.msra.mxu0 0.0
        %1235 = vmatprep.subr.mxu0 0.0
        %1236 = vmatpush1.msra.mxu0 0.0
        %1237 = vmatprep.subr.mxu0 0.0
        %1238 = vmatpush1.msra.mxu0 %v1200
        %1239 = vmatprep.subr.mxu0 0.0
        %1240 = vmatpush1.msra.mxu0 %v1198
        %1241 = vmatprep.subr.mxu0 0.0
        %1242 = vmatpush2.msra.mxu0 0.0
        %1243 = vmatprep.subr.mxu0 0.0
        %1244 = vmatpush2.msra.mxu0 0.0
        %1245 = vmatprep.subr.mxu0 0.0
        %1246 = vmatpush2.msra.mxu0 0.0
        %1247 = vmatprep.subr.mxu0 0.0
        %1248 = vmatpush2.msra.mxu0 0.0
        %1249 = vmatprep.subr.mxu0 0.0
        %1250 = vmatpush2.msra.mxu0 0.0
        %1251 = vmatprep.subr.mxu0 0.0
        %1252 = vmatpush2.msra.mxu0 0.0
        %1253 = vmatprep.subr.mxu0 0.0
        %1254 = vmatpush2.msra.mxu0 0.0
        %1255 = vmatprep.subr.mxu0 0.0
        %1256 = vmatpush2.msra.mxu0 0.0
        %1257 = vmatprep.subr.mxu0 0.0
        %1258 = vmatpush2.msra.mxu0 0.0
        %1259 = vmatprep.subr.mxu0 0.0
        %1260 = vmatpush2.msra.mxu0 0.0
        %1261 = vmatprep.subr.mxu0 0.0
        %1262 = vmatpush2.msra.mxu0 0.0
        %1263 = vmatprep.subr.mxu0 0.0
        %1264 = vmatpush2.msra.mxu0 0.0
        %1265 = vmatprep.subr.mxu0 0.0
        %1266 = vmatpush2.msra.mxu0 0.0
        %1267 = vmatprep.subr.mxu0 0.0
        %1268 = vmatpush2.msra.mxu0 0.0
        %1269 = vmatprep.subr.mxu0 0.0
        %1270 = vmatpush2.msra.mxu0 0.0
        %1271 = vmatprep.subr.mxu0 0.0
        %1272 = vmatpush2.msra.mxu0 0.0
        %1273 = vmatprep.mubr.f32.mxu0 0.0
        %1274 = vmatmul.mubr.f32.gmra.mxu0 %v1204
        %v1275 = vpop.f32.mrf.mxu0
        %v1276 = vadd.f32 0.0, %v1275
        %v1277 = vpop.f32.mrf.mxu0
        %1278 = vmatprep.mubr.f32.mxu0 0.0
        %1279 = vmatmul.mubr.f32.gmra.mxu0 %v1207
        %v1280 = vpop.f32.mrf.mxu0
        %v1281 = vadd.f32 0.0, %v1280
        %v1282 = vpop.f32.mrf.mxu0
        %1283 = vdwg.mxu0
        %1286 = vrot.lane.b32.xlu0 %v1276, 48
        %v1287 = vpop.permute.xlu0 %1286
        %1288 = vrot.lane.b32.xlu0 %v1281, 48
        %v1289 = vpop.permute.xlu0 %1288
        %vm1292 = vcmask 523648
        %1293 = vst.msk [vmem:[#allocation3] sm:$0xff] %vm1292, %v1287
        %1294 = vst.msk [vmem:[#allocation3 + $0x8] sm:$0xff] %vm1292, %v1289
        %v1295 = vld [vmem:[#allocation3] sm:$0xff]
        %v1296 = vld [vmem:[#allocation3 + $0x8] sm:$0xff]
        %v1297 = vld [vmem:[#allocation9] sm:$0xff]
        %v1298 = vld [vmem:[#allocation9 + $0x8] sm:$0xff]
        %v1299 = vld [vmem:[#allocation9 + $0x10] sm:$0xff]
        %v1300 = vld [vmem:[#allocation9 + $0x18] sm:$0xff]
        %v1301 = vld [vmem:[#allocation9 + $0x20] sm:$0xff]
        %v1302 = vld [vmem:[#allocation9 + $0x28] sm:$0xff]
        %v1303 = vld [vmem:[#allocation9 + $0x30] sm:$0xff]
        %v1304 = vld [vmem:[#allocation9 + $0x38] sm:$0xff]
        %v1305 = vld [vmem:[%s4] sm:$0x1]
        %v1307 = vlaneseq
        %v1308 = vshrl.u32 %v1307, 7
        %v1309 = vsub.s32 0, %v1308
        %v1310 = vrot.slane %v1305, %v1309
        %v1313 = vsel %vm340, %v1295, 0
        %v1316 = vsel %vm340, %v1296, 0
        %1318 = vmatprep.subr.mxu0 0.0
        %1319 = vmatpush1.msra.mxu0 0.0
        %1320 = vmatprep.subr.mxu0 0.0
        %1321 = vmatpush1.msra.mxu0 0.0
        %1322 = vmatprep.subr.mxu0 0.0
        %1323 = vmatpush1.msra.mxu0 0.0
        %1324 = vmatprep.subr.mxu0 0.0
        %1325 = vmatpush1.msra.mxu0 0.0
        %1326 = vmatprep.subr.mxu0 0.0
        %1327 = vmatpush1.msra.mxu0 0.0
        %1328 = vmatprep.subr.mxu0 0.0
        %1329 = vmatpush1.msra.mxu0 0.0
        %1330 = vmatprep.subr.mxu0 0.0
        %1331 = vmatpush1.msra.mxu0 0.0
        %1332 = vmatprep.subr.mxu0 0.0
        %1333 = vmatpush1.msra.mxu0 0.0
        %1334 = vmatprep.subr.mxu0 0.0
        %1335 = vmatpush1.msra.mxu0 %v1304
        %1336 = vmatprep.subr.mxu0 0.0
        %1337 = vmatpush1.msra.mxu0 %v1303
        %1338 = vmatprep.subr.mxu0 0.0
        %1339 = vmatpush1.msra.mxu0 %v1302
        %1340 = vmatprep.subr.mxu0 0.0
        %1341 = vmatpush1.msra.mxu0 %v1301
        %1342 = vmatprep.subr.mxu0 0.0
        %1343 = vmatpush1.msra.mxu0 %v1300
        %1344 = vmatprep.subr.mxu0 0.0
        %1345 = vmatpush1.msra.mxu0 %v1299
        %1346 = vmatprep.subr.mxu0 0.0
        %1347 = vmatpush1.msra.mxu0 %v1298
        %1348 = vmatprep.subr.mxu0 0.0
        %1349 = vmatpush1.msra.mxu0 %v1297
        %1350 = vmatprep.subr.mxu0 0.0
        %1351 = vmatpush2.msra.mxu0 0.0
        %1352 = vmatprep.subr.mxu0 0.0
        %1353 = vmatpush2.msra.mxu0 0.0
        %1354 = vmatprep.subr.mxu0 0.0
        %1355 = vmatpush2.msra.mxu0 0.0
        %1356 = vmatprep.subr.mxu0 0.0
        %1357 = vmatpush2.msra.mxu0 0.0
        %1358 = vmatprep.subr.mxu0 0.0
        %1359 = vmatpush2.msra.mxu0 0.0
        %1360 = vmatprep.subr.mxu0 0.0
        %1361 = vmatpush2.msra.mxu0 0.0
        %1362 = vmatprep.subr.mxu0 0.0
        %1363 = vmatpush2.msra.mxu0 0.0
        %1364 = vmatprep.subr.mxu0 0.0
        %1365 = vmatpush2.msra.mxu0 0.0
        %1366 = vmatprep.subr.mxu0 0.0
        %1367 = vmatpush2.msra.mxu0 0.0
        %1368 = vmatprep.subr.mxu0 0.0
        %1369 = vmatpush2.msra.mxu0 0.0
        %1370 = vmatprep.subr.mxu0 0.0
        %1371 = vmatpush2.msra.mxu0 0.0
        %1372 = vmatprep.subr.mxu0 0.0
        %1373 = vmatpush2.msra.mxu0 0.0
        %1374 = vmatprep.subr.mxu0 0.0
        %1375 = vmatpush2.msra.mxu0 0.0
        %1376 = vmatprep.subr.mxu0 0.0
        %1377 = vmatpush2.msra.mxu0 0.0
        %1378 = vmatprep.subr.mxu0 0.0
        %1379 = vmatpush2.msra.mxu0 0.0
        %1380 = vmatprep.subr.mxu0 0.0
        %1381 = vmatpush2.msra.mxu0 0.0
        %1382 = vmatprep.mubr.f32.mxu0 0.0
        %1383 = vmatmul.mubr.f32.gmra.mxu0 %v1313
        %v1384 = vpop.f32.mrf.mxu0
        %v1385 = vadd.f32 %v1310, %v1384
        %v1386 = vpop.f32.mrf.mxu0
        %1387 = vmatprep.mubr.f32.mxu0 0.0
        %1388 = vmatmul.mubr.f32.gmra.mxu0 %v1316
        %v1389 = vpop.f32.mrf.mxu0
        %v1390 = vadd.f32 %v1310, %v1389
        %v1391 = vpop.f32.mrf.mxu0
        %1392 = vdwg.mxu0
        %1393 = vst.msk [vmem:[%s309] sm:$0xff] %vm340, %v1385
        %1394 = vst.msk [vmem:[%s309 + $0x8] sm:$0xff] %vm340, %v1390
        %s1395 = sand.u32 %s146, 1
        %s1396 = scalar_lea.sflag [#allocation6], %s1395
        %s1397 = sand.u32 %s146, 1
        %s1398 = smul.addr %s1397, 64
        %s1399 = scalar_lea.vmem [#allocation10], %s1398
        %s1400 = sand.u32 %s172, 1
        %s1401 = scalar_lea.sflag [#allocation12], %s1400
        %s1402 = sand.u32 %s172, 1
        %s1403 = smul.addr %s1402, 16
        %s1404 = scalar_lea.vmem [#allocation11], %s1403
        // Predicated region
        $region53: #{tpu_custom_call.1} parent=39 // pred_check
          %p1405 = pneg %p156
        $region54: #{tpu_custom_call.1} parent=39 // pred_check_branch
          %1407 = sbr.rel (%p1405) target = $region56
        $region55: #{tpu_custom_call.1} parent=39 // pred_region
          %s1409 = ssub.s32 1024, 1024
          %1410 = vsyncadd %s1396, %s1409
          %s1411 = smul.addr %s28, 8
          %s1412 = smul.addr %s1411, 128
          %s1413 = scalar_lea.hbm %s5, %s1412
          %s1414 = sshll.u32 %s1399, 4
          %s1415 = int_to_ptr.vmem [resolvable:$true] %s1414
          %1420 = dma.vmem_to_hbm [thread:$0]  %s1415, 1024, %s1413, %s1396, 128, 128, 8
        $region56: #{tpu_custom_call.1} parent=39 // pred_fallthru
          _
        // Predicated region
        $region57: #{tpu_custom_call.1} parent=39 // pred_check
          %p1421 = pneg %p182
        $region58: #{tpu_custom_call.1} parent=39 // pred_check_branch
          %1423 = sbr.rel (%p1421) target = $region60
        $region59: #{tpu_custom_call.1} parent=39 // pred_region
          %s1425 = ssub.s32 256, 256
          %1426 = vsyncadd %s1401, %s1425
          %s1427 = smul.addr %s28, 2
          %s1428 = smul.addr %s1427, 128
          %s1429 = scalar_lea.hbm %s6, %s1428
          %s1430 = sshll.u32 %s1404, 4
          %s1431 = int_to_ptr.vmem [resolvable:$true] %s1430
          %1436 = dma.vmem_to_hbm [thread:$0]  %s1431, 256, %s1429, %s1401, 128, 128, 8
        $region60: #{tpu_custom_call.1} parent=39 // pred_fallthru
          _
      $region40: #{tpu_custom_call.1} parent=5 // pred_fallthru
        _
      %p1437 = scmp.le.s32.totalorder 2, %s23
      // Predicated region
      $region61: #{tpu_custom_call.1} parent=5 // pred_check
        %p1438 = pneg %p1437
      $region62: #{tpu_custom_call.1} parent=5 // pred_check_branch
        %1440 = sbr.rel (%p1438) target = $region64
      $region63: #{tpu_custom_call.1} parent=5 // pred_region
        %s1441 = ssub.s32 %s23, 2
        // Predicated region
        $region65: #{tpu_custom_call.1} parent=63 // pred_check
          %p1442 = pneg %p162
        $region66: #{tpu_custom_call.1} parent=63 // pred_check_branch
          %1444 = sbr.rel (%p1442) target = $region68
        $region67: #{tpu_custom_call.1} parent=63 // pred_region
          %s1445 = sand.u32 %s147, 1
          %s1446 = scalar_lea.sflag [#allocation6], %s1445
          %s1447 = sand.u32 %s147, 1
          %s1448 = smul.addr %s1447, 64
          %s1449 = scalar_lea.vmem [#allocation10], %s1448
          %1450 = dma.done %s1446, 1024
        $region68: #{tpu_custom_call.1} parent=63 // pred_fallthru
          _
        // Predicated region
        $region69: #{tpu_custom_call.1} parent=63 // pred_check
          %p1451 = pneg %p188
        $region70: #{tpu_custom_call.1} parent=63 // pred_check_branch
          %1453 = sbr.rel (%p1451) target = $region72
        $region71: #{tpu_custom_call.1} parent=63 // pred_region
          %s1454 = sand.u32 %s173, 1
          %s1455 = scalar_lea.sflag [#allocation12], %s1454
          %s1456 = sand.u32 %s173, 1
          %s1457 = smul.addr %s1456, 16
          %s1458 = scalar_lea.vmem [#allocation11], %s1457
          %1459 = dma.done %s1455, 256
        $region72: #{tpu_custom_call.1} parent=63 // pred_fallthru
          _
      $region64: #{tpu_custom_call.1} parent=5 // pred_fallthru
        _
    $region6: #{tpu_custom_call.1} parent=1 // loop_footer
      %s27 = sadd.s32 1, %s23
    $region7: #{tpu_custom_call.1} parent=1 // loop_footer_branch
      %22 = sbr.rel target = $region3
    $region8: #{tpu_custom_call.1} parent=1 // loop_exit
      _
    %1460 = vsyncpa [#allocation5], 1
    %s1461 = scalar_lea.sflag [#allocation5], 1
    %1462 = vsyncpa %s1461, 1
    %1463 = vsyncpa [#allocation8], 1
    %1464 = vsyncpa [#allocation6], 1
    %s1465 = scalar_lea.sflag [#allocation6], 1
    %1466 = vsyncpa %s1465, 1
    %1467 = vsyncpa [#allocation12], 1
    %s1468 = scalar_lea.sflag [#allocation12], 1
    %1469 = vsyncpa %s1468, 1

</llo_original>
